<compile_context>
chip_gen: v5e
topology: v5e:2x2
jax: 0.10.0
libtpu: 0.0.40
codegen_flags: <defaults>
</compile_context>

<pallas_src>
import jax
import jax.numpy as jnp
from jax.experimental import pallas as pl
from jax.experimental.pallas import tpu as pltpu

OUT_DIM = 30
OUT_PAD = 128  # lane-dense output slab; sliced back to 30 in the wrapper


def _round_up(x, m):
    return ((x + m - 1) // m) * m


def embedding_head_kernel(feat_ref, w1_ref, b1_ref, w2_ref, b2_ref,
                          w3_ref, b3_ref, a1_ref, a2_ref, out_ref):
    # feat_ref: [TB, HW, 512] bf16 tile (channels-last; C=512 on the lane axis).
    # Global average pool == sum over the spatial (sublane/XLU) axis with f32
    # accumulation; the 1/HW scale is folded into w1 by the wrapper.
    emb = jnp.sum(feat_ref[...].astype(jnp.float32), axis=1)        # [TB, 512]

    # PReLU slopes (nn.PReLU() default: single learnable scalar each).
    a1 = a1_ref[0]
    a2 = a2_ref[0]

    # fc[0]: Linear(512, 256) + PReLU
    h1 = jnp.dot(emb, w1_ref[...], preferred_element_type=jnp.float32) + b1_ref[...]
    h1 = jnp.where(h1 >= 0, h1, a1 * h1)

    # fc[2]: Linear(256, 256) + PReLU
    h2 = jnp.dot(h1, w2_ref[...], preferred_element_type=jnp.float32) + b2_ref[...]
    h2 = jnp.where(h2 >= 0, h2, a2 * h2)

    # fc[4]: Linear(256, 30), computed as 256x128 (cols 30..127 zero-padded)
    out = jnp.dot(h2, w3_ref[...], preferred_element_type=jnp.float32) + b3_ref[...]
    out_ref[...] = out


def embedding_net_forward(feat_cl, params):
    """feat_cl: [B, HW, 512] channels-last pre-avgpool resnet18 feature map.

    bf16 input preferred (halves HBM traffic); f32 is accepted and cast here.
    """
    B, HW, C = feat_cl.shape
    assert C == 512
    if feat_cl.dtype != jnp.bfloat16:
        feat_cl = feat_cl.astype(jnp.bfloat16)

    w1, b1, w2, b2, w3, b3, a1, a2 = params
    # Fold the avgpool 1/HW scale into w1 (zero in-kernel cost).
    w1s = (w1 * (1.0 / HW)).astype(jnp.float32)
    # Lane-pad the 30-wide output layer to 128 (extra columns are exactly zero).
    w3p = jnp.pad(w3, ((0, 0), (0, OUT_PAD - OUT_DIM)))
    b3p = jnp.pad(b3, ((0, 0), (0, OUT_PAD - OUT_DIM)))

    # Batch tiling: TB rows per grid step. TB=64 bf16 @ HW=49 is ~3.2 MB per
    # feat buffer (x2 double-buffered), safe under every generation's scoped
    # VMEM budget while amortizing the ~0.35 us/step grid overhead.
    TB = min(64, _round_up(B, 8))
    B_pad = _round_up(B, TB)
    if B_pad != B:
        feat_cl = jnp.pad(feat_cl, ((0, B_pad - B), (0, 0), (0, 0)))

    grid = (B_pad // TB,)

    out = pl.pallas_call(
        embedding_head_kernel,
        out_shape=jax.ShapeDtypeStruct((B_pad, OUT_PAD), jnp.float32),
        grid=grid,
        in_specs=[
            pl.BlockSpec((TB, HW, C), lambda i: (i, 0, 0)),       # feat tile
            pl.BlockSpec((512, 256), lambda i: (0, 0)),           # w1 (pre-scaled)
            pl.BlockSpec((1, 256), lambda i: (0, 0)),             # b1
            pl.BlockSpec((256, 256), lambda i: (0, 0)),           # w2
            pl.BlockSpec((1, 256), lambda i: (0, 0)),             # b2
            pl.BlockSpec((256, OUT_PAD), lambda i: (0, 0)),       # w3 (padded)
            pl.BlockSpec((1, OUT_PAD), lambda i: (0, 0)),         # b3 (padded)
            pl.BlockSpec(memory_space=pltpu.MemorySpace.SMEM),    # a1 (PReLU)
            pl.BlockSpec(memory_space=pltpu.MemorySpace.SMEM),    # a2 (PReLU)
        ],
        out_specs=pl.BlockSpec((TB, OUT_PAD), lambda i: (i, 0)),
        compiler_params=pltpu.CompilerParams(
            dimension_semantics=("parallel",),        # megacore sharding on v7x
            vmem_limit_bytes=48 * 1024 * 1024),
    )(feat_cl, w1s, b1, w2, b2, w3p, b3p, a1, a2)

    return out[:B, :OUT_DIM]


def nchw_to_channels_last(feat_nchw):
    # TODO(synk): ideally the conv backbone emits [B, H*W, 512] bf16 directly;
    # this transpose is a separate HBM read+write of the whole feature map and
    # dominates the cost of the (memory-bound) head kernel when it can't fuse.
    B, C, H, W = feat_nchw.shape
    return (jnp.transpose(feat_nchw, (0, 2, 3, 1))
            .reshape(B, H * W, C)
            .astype(jnp.bfloat16))


def init_params(key):
    k1, k2, k3, k4, k5, k6 = jax.random.split(key, 6)
    # Weights stored [in, out] (transpose of PyTorch's [out, in]) so the kernel
    # can do x @ W directly.
    w1 = jax.random.normal(k1, (512, 256), jnp.float32) * 0.02
    b1 = jax.random.normal(k2, (1, 256), jnp.float32) * 0.02
    w2 = jax.random.normal(k3, (256, 256), jnp.float32) * 0.02
    b2 = jax.random.normal(k4, (1, 256), jnp.float32) * 0.02
    w3 = jax.random.normal(k5, (256, 30), jnp.float32) * 0.02
    b3 = jax.random.normal(k6, (1, 30), jnp.float32) * 0.02
    a1 = jnp.array([0.25], jnp.float32)   # nn.PReLU() default init
    a2 = jnp.array([0.25], jnp.float32)
    return (w1, b1, w2, b2, w3, b3, a1, a2)


def reference_forward(feat_nchw, params):
    w1, b1, w2, b2, w3, b3, a1, a2 = params
    emb = jnp.mean(feat_nchw, axis=(2, 3))               # avgpool -> [B, 512]
    h1 = emb @ w1 + b1
    h1 = jnp.where(h1 >= 0, h1, a1[0] * h1)
    h2 = h1 @ w2 + b2
    h2 = jnp.where(h2 >= 0, h2, a2[0] * h2)
    return h2 @ w3 + b3


if __name__ == "__main__":
    key = jax.random.PRNGKey(0)
    k_feat, k_params = jax.random.split(key)

    # Realistic resnet18 pre-avgpool feature map at small batch:
    # B=2 (non-multiple-of-8 -> exercises batch padding), C=512, 7x7 (HW=49).
    feat_nchw = jax.random.normal(k_feat, (2, 512, 7, 7), jnp.float32)
    params = init_params(k_params)

    feat_cl = nchw_to_channels_last(feat_nchw)
    fwd = jax.jit(embedding_net_forward)
    out = jax.block_until_ready(fwd(feat_cl, params))

    # Reference computed from the same bf16-rounded features.
    feat_ref = feat_nchw.astype(jnp.bfloat16).astype(jnp.float32)
    ref = reference_forward(feat_ref, params)

    assert out.shape == (2, 30), out.shape
    assert jnp.allclose(out, ref, atol=2e-3, rtol=2e-3), "mismatch vs reference"

    print("KERNEL_OK")
</pallas_src>

<mosaic_0001>
module attributes {stable_mosaic.version = 11 : i64} {
  func.func @embedding_head_kernel(%arg0: i32, %arg1: memref<8x49x512xbf16, #tpu.memory_space<vmem>>, %arg2: memref<512x256xf32, #tpu.memory_space<vmem>>, %arg3: memref<1x256xf32, #tpu.memory_space<vmem>>, %arg4: memref<256x256xf32, #tpu.memory_space<vmem>>, %arg5: memref<1x256xf32, #tpu.memory_space<vmem>>, %arg6: memref<256x128xf32, #tpu.memory_space<vmem>>, %arg7: memref<1x128xf32, #tpu.memory_space<vmem>>, %arg8: memref<1xf32, #tpu.memory_space<smem>>, %arg9: memref<1xf32, #tpu.memory_space<smem>>, %arg10: memref<8x128xf32, #tpu.memory_space<vmem>>) attributes {dimension_semantics = [#tpu.dimension_semantics<parallel>], iteration_bounds = array<i64: 1>, scalar_prefetch = 0 : i64, scratch_operands = 0 : i64, tpu.core_type = #tpu.core_type<tc>, window_params = [{transform_indices = @transform_0, window_bounds = array<i64: 8, 49, 512>}, {pipeline_mode = #tpu.pipeline_mode<synchronous>, transform_indices = @transform_1, window_bounds = array<i64: 512, 256>}, {pipeline_mode = #tpu.pipeline_mode<synchronous>, transform_indices = @transform_2, window_bounds = array<i64: 1, 256>}, {pipeline_mode = #tpu.pipeline_mode<synchronous>, transform_indices = @transform_3, window_bounds = array<i64: 256, 256>}, {pipeline_mode = #tpu.pipeline_mode<synchronous>, transform_indices = @transform_4, window_bounds = array<i64: 1, 256>}, {pipeline_mode = #tpu.pipeline_mode<synchronous>, transform_indices = @transform_5, window_bounds = array<i64: 256, 128>}, {pipeline_mode = #tpu.pipeline_mode<synchronous>, transform_indices = @transform_6, window_bounds = array<i64: 1, 128>}, {transform_indices = @transform_7, window_bounds = array<i64: 1>}, {transform_indices = @transform_8, window_bounds = array<i64: 1>}, {transform_indices = @transform_9, window_bounds = array<i64: 8, 128>}]} {
    %c0 = arith.constant 0 : index
    %c0_0 = arith.constant 0 : index
    %c0_1 = arith.constant 0 : index
    %0 = vector.load %arg1[%c0, %c0_0, %c0_1] : memref<8x49x512xbf16, #tpu.memory_space<vmem>>, vector<8x49x512xbf16>
    %1 = arith.extf %0 : vector<8x49x512xbf16> to vector<8x49x512xf32>
    %cst = arith.constant dense<0.000000e+00> : vector<8x512xf32>
    %2 = vector.multi_reduction <add>, %1, %cst [1] : vector<8x49x512xf32> to vector<8x512xf32>
    %c0_2 = arith.constant 0 : index
    %3 = memref.load %arg8[%c0_2] : memref<1xf32, #tpu.memory_space<smem>>
    %c0_3 = arith.constant 0 : index
    %4 = memref.load %arg9[%c0_3] : memref<1xf32, #tpu.memory_space<smem>>
    %c0_4 = arith.constant 0 : index
    %c0_5 = arith.constant 0 : index
    %5 = vector.load %arg2[%c0_4, %c0_5] : memref<512x256xf32, #tpu.memory_space<vmem>>, vector<512x256xf32>
    %cst_6 = arith.constant dense<0.000000e+00> : vector<8x256xf32>
    %6 = tpu.matmul %2, %5, %cst_6 {dimension_numbers = #tpu.dot_dimension_numbers<[1], [0], [0], [1], [0, 0, 1, 1], [], []>} : vector<8x512xf32>, vector<512x256xf32>, vector<8x256xf32> -> vector<8x256xf32>
    %c0_7 = arith.constant 0 : index
    %c0_8 = arith.constant 0 : index
    %7 = vector.load %arg3[%c0_7, %c0_8] : memref<1x256xf32, #tpu.memory_space<vmem>>, vector<1x256xf32>
    %8 = vector.broadcast %7 : vector<1x256xf32> to vector<8x256xf32>
    %9 = arith.addf %6, %8 : vector<8x256xf32>
    %cst_9 = arith.constant 0.000000e+00 : f32
    %10 = vector.broadcast %cst_9 : f32 to vector<8x256xf32>
    %11 = arith.cmpf oge, %9, %10 : vector<8x256xf32>
    %12 = vector.broadcast %3 : f32 to vector<8x256xf32>
    %13 = arith.mulf %12, %9 : vector<8x256xf32>
    %14 = arith.select %11, %9, %13 : vector<8x256xi1>, vector<8x256xf32>
    %c0_10 = arith.constant 0 : index
    %c0_11 = arith.constant 0 : index
    %15 = vector.load %arg4[%c0_10, %c0_11] : memref<256x256xf32, #tpu.memory_space<vmem>>, vector<256x256xf32>
    %cst_12 = arith.constant dense<0.000000e+00> : vector<8x256xf32>
    %16 = tpu.matmul %14, %15, %cst_12 {dimension_numbers = #tpu.dot_dimension_numbers<[1], [0], [0], [1], [0, 0, 1, 1], [], []>} : vector<8x256xf32>, vector<256x256xf32>, vector<8x256xf32> -> vector<8x256xf32>
    %c0_13 = arith.constant 0 : index
    %c0_14 = arith.constant 0 : index
    %17 = vector.load %arg5[%c0_13, %c0_14] : memref<1x256xf32, #tpu.memory_space<vmem>>, vector<1x256xf32>
    %18 = vector.broadcast %17 : vector<1x256xf32> to vector<8x256xf32>
    %19 = arith.addf %16, %18 : vector<8x256xf32>
    %cst_15 = arith.constant 0.000000e+00 : f32
    %20 = vector.broadcast %cst_15 : f32 to vector<8x256xf32>
    %21 = arith.cmpf oge, %19, %20 : vector<8x256xf32>
    %22 = vector.broadcast %4 : f32 to vector<8x256xf32>
    %23 = arith.mulf %22, %19 : vector<8x256xf32>
    %24 = arith.select %21, %19, %23 : vector<8x256xi1>, vector<8x256xf32>
    %c0_16 = arith.constant 0 : index
    %c0_17 = arith.constant 0 : index
    %25 = vector.load %arg6[%c0_16, %c0_17] : memref<256x128xf32, #tpu.memory_space<vmem>>, vector<256x128xf32>
    %cst_18 = arith.constant dense<0.000000e+00> : vector<8x128xf32>
    %26 = tpu.matmul %24, %25, %cst_18 {dimension_numbers = #tpu.dot_dimension_numbers<[1], [0], [0], [1], [0, 0, 1, 1], [], []>} : vector<8x256xf32>, vector<256x128xf32>, vector<8x128xf32> -> vector<8x128xf32>
    %c0_19 = arith.constant 0 : index
    %c0_20 = arith.constant 0 : index
    %27 = vector.load %arg7[%c0_19, %c0_20] : memref<1x128xf32, #tpu.memory_space<vmem>>, vector<1x128xf32>
    %28 = vector.broadcast %27 : vector<1x128xf32> to vector<8x128xf32>
    %29 = arith.addf %26, %28 : vector<8x128xf32>
    %c0_21 = arith.constant 0 : index
    %c0_22 = arith.constant 0 : index
    %30 = vector.load %arg10[%c0_21, %c0_22] : memref<8x128xf32, #tpu.memory_space<vmem>>, vector<8x128xf32>
    tpu.vector_store %arg10[%c0_21, %c0_22], %29 {strides = array<i32>} : memref<8x128xf32, #tpu.memory_space<vmem>>, vector<8x128xf32>,
    return
  }
  func.func @transform_0(%arg0: i32) -> (i32, i32, i32) {
    %c0_i32 = arith.constant 0 : i32
    %c0_i32_0 = arith.constant 0 : i32
    %c0_i32_1 = arith.constant 0 : i32
    return %arg0, %c0_i32, %c0_i32_0 : i32, i32, i32
  }
  func.func @transform_1(%arg0: i32) -> (i32, i32) {
    %c0_i32 = arith.constant 0 : i32
    %c0_i32_0 = arith.constant 0 : i32
    %c0_i32_1 = arith.constant 0 : i32
    return %c0_i32, %c0_i32_0 : i32, i32
  }
  func.func @transform_2(%arg0: i32) -> (i32, i32) {
    %c0_i32 = arith.constant 0 : i32
    %c0_i32_0 = arith.constant 0 : i32
    %c0_i32_1 = arith.constant 0 : i32
    return %c0_i32, %c0_i32_0 : i32, i32
  }
  func.func @transform_3(%arg0: i32) -> (i32, i32) {
    %c0_i32 = arith.constant 0 : i32
    %c0_i32_0 = arith.constant 0 : i32
    %c0_i32_1 = arith.constant 0 : i32
    return %c0_i32, %c0_i32_0 : i32, i32
  }
  func.func @transform_4(%arg0: i32) -> (i32, i32) {
    %c0_i32 = arith.constant 0 : i32
    %c0_i32_0 = arith.constant 0 : i32
    %c0_i32_1 = arith.constant 0 : i32
    return %c0_i32, %c0_i32_0 : i32, i32
  }
  func.func @transform_5(%arg0: i32) -> (i32, i32) {
    %c0_i32 = arith.constant 0 : i32
    %c0_i32_0 = arith.constant 0 : i32
    %c0_i32_1 = arith.constant 0 : i32
    return %c0_i32, %c0_i32_0 : i32, i32
  }
  func.func @transform_6(%arg0: i32) -> (i32, i32) {
    %c0_i32 = arith.constant 0 : i32
    %c0_i32_0 = arith.constant 0 : i32
    %c0_i32_1 = arith.constant 0 : i32
    return %c0_i32, %c0_i32_0 : i32, i32
  }
  func.func @transform_7(%arg0: i32) -> i32 {
    %c0_i32 = arith.constant 0 : i32
    %c0_i32_0 = arith.constant 0 : i32
    return %c0_i32 : i32
  }
  func.func @transform_8(%arg0: i32) -> i32 {
    %c0_i32 = arith.constant 0 : i32
    %c0_i32_0 = arith.constant 0 : i32
    return %c0_i32 : i32
  }
  func.func @transform_9(%arg0: i32) -> (i32, i32) {
    %c0_i32 = arith.constant 0 : i32
    %c0_i32_0 = arith.constant 0 : i32
    return %arg0, %c0_i32 : i32, i32
  }
}

</mosaic_0001>

<llo_original>
// kernel: embedding_net_forward.1
$region0: #{embedding_net_forward.1}
  #allocation0 [shape = 'u32[]', space=smem, size = 0x4, offset = 0x4, fixed_abs, tag = 'smem constant byte address 0x4 - core index']
  #allocation1 [shape = 'u32[72,128]{1,0:T(1,128)}', space=vmem, size = 0x9000, scoped, tag = 'internal scratch']
  #allocation2 [shape = 'f32[1]{0:T(128)S(6)}', space=smem, size = 0x200, scoped, tag = 'scoped memory for embedding_net_forward.1']
  #allocation3 [shape = 'f32[1]{0:T(128)S(6)}', space=smem, size = 0x200, scoped, tag = 'scoped memory for embedding_net_forward.1']
  %s0 = inlined_call_operand.vmem [shape: bf16[8,49,512], index: 0, kind: input, shape index: {}]
  %s1 = inlined_call_operand.vmem [shape: f32[512,256], index: 1, kind: input, shape index: {}]
  %s2 = inlined_call_operand.vmem [shape: f32[1,256], index: 2, kind: input, shape index: {}]
  %s3 = inlined_call_operand.vmem [shape: f32[256,256], index: 3, kind: input, shape index: {}]
  %s4 = inlined_call_operand.vmem [shape: f32[1,256], index: 4, kind: input, shape index: {}]
  %s5 = inlined_call_operand.vmem [shape: f32[256,128], index: 5, kind: input, shape index: {}]
  %s6 = inlined_call_operand.vmem [shape: f32[1,128], index: 6, kind: input, shape index: {}]
  %s7 = inlined_call_operand.<no memory space> [shape: f32[1], index: 7, kind: input, shape index: {}]
  %s8 = inlined_call_operand.<no memory space> [shape: f32[1], index: 8, kind: input, shape index: {}]
  %s9 = inlined_call_operand.vmem [shape: f32[8,128], index: 9, kind: output, shape index: {}]
  %s10 = sld [smem:[#allocation0]]
  $region46: #{embedding_net_forward.1} parent=0
    _
  %s12 = ssub.s32 1, %s10
  %s13 = scalar_select 0, %s12, %s10
  %14 = sst [smem:[#allocation2]] %s7
  %15 = sst [smem:[#allocation3]] %s8
  // Predicated region
  $region2: #{embedding_net_forward.1} parent=0 // pred_check
    _
  $region3: #{embedding_net_forward.1} parent=0 // pred_check_branch
    %17 = sbr.rel (0) target = $region5
  $region4: #{embedding_net_forward.1} parent=0 // pred_region
    _
  $region5: #{embedding_net_forward.1} parent=0 // pred_fallthru
    _
  // Predicated region
  $region6: #{embedding_net_forward.1} parent=0 // pred_check
    _
  $region7: #{embedding_net_forward.1} parent=0 // pred_check_branch
    %19 = sbr.rel (0) target = $region9
  $region8: #{embedding_net_forward.1} parent=0 // pred_region
    _
  $region9: #{embedding_net_forward.1} parent=0 // pred_fallthru
    _
  // Predicated region
  $region10: #{embedding_net_forward.1} parent=0 // pred_check
    _
  $region11: #{embedding_net_forward.1} parent=0 // pred_check_branch
    %21 = sbr.rel (0) target = $region13
  $region12: #{embedding_net_forward.1} parent=0 // pred_region
    _
  $region13: #{embedding_net_forward.1} parent=0 // pred_fallthru
    _
  // Predicated region
  $region14: #{embedding_net_forward.1} parent=0 // pred_check
    _
  $region15: #{embedding_net_forward.1} parent=0 // pred_check_branch
    %23 = sbr.rel (0) target = $region17
  $region16: #{embedding_net_forward.1} parent=0 // pred_region
    _
  $region17: #{embedding_net_forward.1} parent=0 // pred_fallthru
    _
  // Predicated region
  $region18: #{embedding_net_forward.1} parent=0 // pred_check
    _
  $region19: #{embedding_net_forward.1} parent=0 // pred_check_branch
    %25 = sbr.rel (0) target = $region21
  $region20: #{embedding_net_forward.1} parent=0 // pred_region
    _
  $region21: #{embedding_net_forward.1} parent=0 // pred_fallthru
    _
  // Predicated region
  $region22: #{embedding_net_forward.1} parent=0 // pred_check
    _
  $region23: #{embedding_net_forward.1} parent=0 // pred_check_branch
    %27 = sbr.rel (0) target = $region25
  $region24: #{embedding_net_forward.1} parent=0 // pred_region
    _
  $region25: #{embedding_net_forward.1} parent=0 // pred_fallthru
    _
  // Predicated region
  $region26: #{embedding_net_forward.1} parent=0 // pred_check
    _
  $region27: #{embedding_net_forward.1} parent=0 // pred_check_branch
    %29 = sbr.rel (0) target = $region29
  $region28: #{embedding_net_forward.1} parent=0 // pred_region
    _
  $region29: #{embedding_net_forward.1} parent=0 // pred_fallthru
    _
  // Predicated region
  $region30: #{embedding_net_forward.1} parent=0 // pred_check
    _
  $region31: #{embedding_net_forward.1} parent=0 // pred_check_branch
    %31 = sbr.rel (0) target = $region33
  $region32: #{embedding_net_forward.1} parent=0 // pred_region
    _
  $region33: #{embedding_net_forward.1} parent=0 // pred_fallthru
    _
  // Predicated region
  $region34: #{embedding_net_forward.1} parent=0 // pred_check
    _
  $region35: #{embedding_net_forward.1} parent=0 // pred_check_branch
    %33 = sbr.rel (0) target = $region37
  $region36: #{embedding_net_forward.1} parent=0 // pred_region
    _
  $region37: #{embedding_net_forward.1} parent=0 // pred_fallthru
    _
  %v34 = vld [vmem:[%s0] sm:$0xff]
  %v35 = vld [vmem:[%s0 + $0x8] sm:$0xff]
  %v36 = vld [vmem:[%s0 + $0x10] sm:$0xff]
  %v37 = vld [vmem:[%s0 + $0x18] sm:$0xff]
  %v38 = vld [vmem:[%s0 + $0x20] sm:$0xff]
  %v39 = vld [vmem:[%s0 + $0x28] sm:$0xff]
  %v40 = vld [vmem:[%s0 + $0x30] sm:$0xff]
  %v41 = vld [vmem:[%s0 + $0x38] sm:$0xff]
  %v42 = vld [vmem:[%s0 + $0x40] sm:$0xff]
  %v43 = vld [vmem:[%s0 + $0x48] sm:$0xff]
  %v44 = vld [vmem:[%s0 + $0x50] sm:$0xff]
  %v45 = vld [vmem:[%s0 + $0x58] sm:$0xff]
  %v46 = vld [vmem:[%s0 + $0x60] sm:$0x11]
  %v47 = vld [vmem:[%s0 + $0x68] sm:$0x11]
  %v48 = vld [vmem:[%s0 + $0x70] sm:$0xff]
  %v49 = vld [vmem:[%s0 + $0x78] sm:$0xff]
  %v50 = vld [vmem:[%s0 + $0x80] sm:$0xff]
  %v51 = vld [vmem:[%s0 + $0x88] sm:$0xff]
  %v52 = vld [vmem:[%s0 + $0x90] sm:$0xff]
  %v53 = vld [vmem:[%s0 + $0x98] sm:$0xff]
  %v54 = vld [vmem:[%s0 + $0xa0] sm:$0xff]
  %v55 = vld [vmem:[%s0 + $0xa8] sm:$0xff]
  %v56 = vld [vmem:[%s0 + $0xb0] sm:$0xff]
  %v57 = vld [vmem:[%s0 + $0xb8] sm:$0xff]
  %v58 = vld [vmem:[%s0 + $0xc0] sm:$0xff]
  %v59 = vld [vmem:[%s0 + $0xc8] sm:$0xff]
  %v60 = vld [vmem:[%s0 + $0xd0] sm:$0x11]
  %v61 = vld [vmem:[%s0 + $0xd8] sm:$0x11]
  %v62 = vld [vmem:[%s0 + $0xe0] sm:$0xff]
  %v63 = vld [vmem:[%s0 + $0xe8] sm:$0xff]
  %v64 = vld [vmem:[%s0 + $0xf0] sm:$0xff]
  %v65 = vld [vmem:[%s0 + $0xf8] sm:$0xff]
  %v66 = vld [vmem:[%s0 + $0x100] sm:$0xff]
  %v67 = vld [vmem:[%s0 + $0x108] sm:$0xff]
  %v68 = vld [vmem:[%s0 + $0x110] sm:$0xff]
  %v69 = vld [vmem:[%s0 + $0x118] sm:$0xff]
  %v70 = vld [vmem:[%s0 + $0x120] sm:$0xff]
  %v71 = vld [vmem:[%s0 + $0x128] sm:$0xff]
  %v72 = vld [vmem:[%s0 + $0x130] sm:$0xff]
  %v73 = vld [vmem:[%s0 + $0x138] sm:$0xff]
  %v74 = vld [vmem:[%s0 + $0x140] sm:$0x11]
  %v75 = vld [vmem:[%s0 + $0x148] sm:$0x11]
  %v76 = vld [vmem:[%s0 + $0x150] sm:$0xff]
  %v77 = vld [vmem:[%s0 + $0x158] sm:$0xff]
  %v78 = vld [vmem:[%s0 + $0x160] sm:$0xff]
  %v79 = vld [vmem:[%s0 + $0x168] sm:$0xff]
  %v80 = vld [vmem:[%s0 + $0x170] sm:$0xff]
  %v81 = vld [vmem:[%s0 + $0x178] sm:$0xff]
  %v82 = vld [vmem:[%s0 + $0x180] sm:$0xff]
  %v83 = vld [vmem:[%s0 + $0x188] sm:$0xff]
  %v84 = vld [vmem:[%s0 + $0x190] sm:$0xff]
  %v85 = vld [vmem:[%s0 + $0x198] sm:$0xff]
  %v86 = vld [vmem:[%s0 + $0x1a0] sm:$0xff]
  %v87 = vld [vmem:[%s0 + $0x1a8] sm:$0xff]
  %v88 = vld [vmem:[%s0 + $0x1b0] sm:$0x11]
  %v89 = vld [vmem:[%s0 + $0x1b8] sm:$0x11]
  %v90 = vld [vmem:[%s0 + $0x1c0] sm:$0xff]
  %v91 = vld [vmem:[%s0 + $0x1c8] sm:$0xff]
  %v92 = vld [vmem:[%s0 + $0x1d0] sm:$0xff]
  %v93 = vld [vmem:[%s0 + $0x1d8] sm:$0xff]
  %v94 = vld [vmem:[%s0 + $0x1e0] sm:$0xff]
  %v95 = vld [vmem:[%s0 + $0x1e8] sm:$0xff]
  %v96 = vld [vmem:[%s0 + $0x1f0] sm:$0xff]
  %v97 = vld [vmem:[%s0 + $0x1f8] sm:$0xff]
  %v98 = vld [vmem:[%s0 + $0x200] sm:$0xff]
  %v99 = vld [vmem:[%s0 + $0x208] sm:$0xff]
  %v100 = vld [vmem:[%s0 + $0x210] sm:$0xff]
  %v101 = vld [vmem:[%s0 + $0x218] sm:$0xff]
  %v102 = vld [vmem:[%s0 + $0x220] sm:$0x11]
  %v103 = vld [vmem:[%s0 + $0x228] sm:$0x11]
  %v104 = vld [vmem:[%s0 + $0x230] sm:$0xff]
  %v105 = vld [vmem:[%s0 + $0x238] sm:$0xff]
  %v106 = vld [vmem:[%s0 + $0x240] sm:$0xff]
  %v107 = vld [vmem:[%s0 + $0x248] sm:$0xff]
  %v108 = vld [vmem:[%s0 + $0x250] sm:$0xff]
  %v109 = vld [vmem:[%s0 + $0x258] sm:$0xff]
  %v110 = vld [vmem:[%s0 + $0x260] sm:$0xff]
  %v111 = vld [vmem:[%s0 + $0x268] sm:$0xff]
  %v112 = vld [vmem:[%s0 + $0x270] sm:$0xff]
  %v113 = vld [vmem:[%s0 + $0x278] sm:$0xff]
  %v114 = vld [vmem:[%s0 + $0x280] sm:$0xff]
  %v115 = vld [vmem:[%s0 + $0x288] sm:$0xff]
  %v116 = vld [vmem:[%s0 + $0x290] sm:$0x11]
  %v117 = vld [vmem:[%s0 + $0x298] sm:$0x11]
  %v118 = vld [vmem:[%s0 + $0x2a0] sm:$0xff]
  %v119 = vld [vmem:[%s0 + $0x2a8] sm:$0xff]
  %v120 = vld [vmem:[%s0 + $0x2b0] sm:$0xff]
  %v121 = vld [vmem:[%s0 + $0x2b8] sm:$0xff]
  %v122 = vld [vmem:[%s0 + $0x2c0] sm:$0xff]
  %v123 = vld [vmem:[%s0 + $0x2c8] sm:$0xff]
  %v124 = vld [vmem:[%s0 + $0x2d0] sm:$0xff]
  %v125 = vld [vmem:[%s0 + $0x2d8] sm:$0xff]
  %v126 = vld [vmem:[%s0 + $0x2e0] sm:$0xff]
  %v127 = vld [vmem:[%s0 + $0x2e8] sm:$0xff]
  %v128 = vld [vmem:[%s0 + $0x2f0] sm:$0xff]
  %v129 = vld [vmem:[%s0 + $0x2f8] sm:$0xff]
  %v130 = vld [vmem:[%s0 + $0x300] sm:$0x11]
  %v131 = vld [vmem:[%s0 + $0x308] sm:$0x11]
  %v132 = vld [vmem:[%s0 + $0x310] sm:$0xff]
  %v133 = vld [vmem:[%s0 + $0x318] sm:$0xff]
  %v134 = vld [vmem:[%s0 + $0x320] sm:$0xff]
  %v135 = vld [vmem:[%s0 + $0x328] sm:$0xff]
  %v136 = vld [vmem:[%s0 + $0x330] sm:$0xff]
  %v137 = vld [vmem:[%s0 + $0x338] sm:$0xff]
  %v138 = vld [vmem:[%s0 + $0x340] sm:$0xff]
  %v139 = vld [vmem:[%s0 + $0x348] sm:$0xff]
  %v140 = vld [vmem:[%s0 + $0x350] sm:$0xff]
  %v141 = vld [vmem:[%s0 + $0x358] sm:$0xff]
  %v142 = vld [vmem:[%s0 + $0x360] sm:$0xff]
  %v143 = vld [vmem:[%s0 + $0x368] sm:$0xff]
  %v144 = vld [vmem:[%s0 + $0x370] sm:$0x11]
  %v145 = vld [vmem:[%s0 + $0x378] sm:$0x11]
  %v146 = vunpack.c.l.bf16 %v34
  %v147 = vunpack.c.h.bf16 %v34
  %v148 = vunpack.c.l.bf16 %v35
  %v149 = vunpack.c.h.bf16 %v35
  %v150 = vunpack.c.l.bf16 %v36
  %v151 = vunpack.c.h.bf16 %v36
  %v152 = vunpack.c.l.bf16 %v37
  %v153 = vunpack.c.h.bf16 %v37
  %v154 = vunpack.c.l.bf16 %v38
  %v155 = vunpack.c.h.bf16 %v38
  %v156 = vunpack.c.l.bf16 %v39
  %v157 = vunpack.c.h.bf16 %v39
  %v158 = vunpack.c.l.bf16 %v40
  %v159 = vunpack.c.h.bf16 %v40
  %v160 = vunpack.c.l.bf16 %v41
  %v161 = vunpack.c.h.bf16 %v41
  %v162 = vunpack.c.l.bf16 %v42
  %v163 = vunpack.c.h.bf16 %v42
  %v164 = vunpack.c.l.bf16 %v43
  %v165 = vunpack.c.h.bf16 %v43
  %v166 = vunpack.c.l.bf16 %v44
  %v167 = vunpack.c.h.bf16 %v44
  %v168 = vunpack.c.l.bf16 %v45
  %v169 = vunpack.c.h.bf16 %v45
  %v170 = vunpack.c.l.bf16 %v46
  %v171 = vunpack.c.h.bf16 %v46
  %v172 = vunpack.c.l.bf16 %v47
  %v173 = vunpack.c.h.bf16 %v47
  %v174 = vunpack.c.l.bf16 %v48
  %v175 = vunpack.c.h.bf16 %v48
  %v176 = vunpack.c.l.bf16 %v49
  %v177 = vunpack.c.h.bf16 %v49
  %v178 = vunpack.c.l.bf16 %v50
  %v179 = vunpack.c.h.bf16 %v50
  %v180 = vunpack.c.l.bf16 %v51
  %v181 = vunpack.c.h.bf16 %v51
  %v182 = vunpack.c.l.bf16 %v52
  %v183 = vunpack.c.h.bf16 %v52
  %v184 = vunpack.c.l.bf16 %v53
  %v185 = vunpack.c.h.bf16 %v53
  %v186 = vunpack.c.l.bf16 %v54
  %v187 = vunpack.c.h.bf16 %v54
  %v188 = vunpack.c.l.bf16 %v55
  %v189 = vunpack.c.h.bf16 %v55
  %v190 = vunpack.c.l.bf16 %v56
  %v191 = vunpack.c.h.bf16 %v56
  %v192 = vunpack.c.l.bf16 %v57
  %v193 = vunpack.c.h.bf16 %v57
  %v194 = vunpack.c.l.bf16 %v58
  %v195 = vunpack.c.h.bf16 %v58
  %v196 = vunpack.c.l.bf16 %v59
  %v197 = vunpack.c.h.bf16 %v59
  %v198 = vunpack.c.l.bf16 %v60
  %v199 = vunpack.c.h.bf16 %v60
  %v200 = vunpack.c.l.bf16 %v61
  %v201 = vunpack.c.h.bf16 %v61
  %v202 = vunpack.c.l.bf16 %v62
  %v203 = vunpack.c.h.bf16 %v62
  %v204 = vunpack.c.l.bf16 %v63
  %v205 = vunpack.c.h.bf16 %v63
  %v206 = vunpack.c.l.bf16 %v64
  %v207 = vunpack.c.h.bf16 %v64
  %v208 = vunpack.c.l.bf16 %v65
  %v209 = vunpack.c.h.bf16 %v65
  %v210 = vunpack.c.l.bf16 %v66
  %v211 = vunpack.c.h.bf16 %v66
  %v212 = vunpack.c.l.bf16 %v67
  %v213 = vunpack.c.h.bf16 %v67
  %v214 = vunpack.c.l.bf16 %v68
  %v215 = vunpack.c.h.bf16 %v68
  %v216 = vunpack.c.l.bf16 %v69
  %v217 = vunpack.c.h.bf16 %v69
  %v218 = vunpack.c.l.bf16 %v70
  %v219 = vunpack.c.h.bf16 %v70
  %v220 = vunpack.c.l.bf16 %v71
  %v221 = vunpack.c.h.bf16 %v71
  %v222 = vunpack.c.l.bf16 %v72
  %v223 = vunpack.c.h.bf16 %v72
  %v224 = vunpack.c.l.bf16 %v73
  %v225 = vunpack.c.h.bf16 %v73
  %v226 = vunpack.c.l.bf16 %v74
  %v227 = vunpack.c.h.bf16 %v74
  %v228 = vunpack.c.l.bf16 %v75
  %v229 = vunpack.c.h.bf16 %v75
  %v230 = vunpack.c.l.bf16 %v76
  %v231 = vunpack.c.h.bf16 %v76
  %v232 = vunpack.c.l.bf16 %v77
  %v233 = vunpack.c.h.bf16 %v77
  %v234 = vunpack.c.l.bf16 %v78
  %v235 = vunpack.c.h.bf16 %v78
  %v236 = vunpack.c.l.bf16 %v79
  %v237 = vunpack.c.h.bf16 %v79
  %v238 = vunpack.c.l.bf16 %v80
  %v239 = vunpack.c.h.bf16 %v80
  %v240 = vunpack.c.l.bf16 %v81
  %v241 = vunpack.c.h.bf16 %v81
  %v242 = vunpack.c.l.bf16 %v82
  %v243 = vunpack.c.h.bf16 %v82
  %v244 = vunpack.c.l.bf16 %v83
  %v245 = vunpack.c.h.bf16 %v83
  %v246 = vunpack.c.l.bf16 %v84
  %v247 = vunpack.c.h.bf16 %v84
  %v248 = vunpack.c.l.bf16 %v85
  %v249 = vunpack.c.h.bf16 %v85
  %v250 = vunpack.c.l.bf16 %v86
  %v251 = vunpack.c.h.bf16 %v86
  %v252 = vunpack.c.l.bf16 %v87
  %v253 = vunpack.c.h.bf16 %v87
  %v254 = vunpack.c.l.bf16 %v88
  %v255 = vunpack.c.h.bf16 %v88
  %v256 = vunpack.c.l.bf16 %v89
  %v257 = vunpack.c.h.bf16 %v89
  %v258 = vunpack.c.l.bf16 %v90
  %v259 = vunpack.c.h.bf16 %v90
  %v260 = vunpack.c.l.bf16 %v91
  %v261 = vunpack.c.h.bf16 %v91
  %v262 = vunpack.c.l.bf16 %v92
  %v263 = vunpack.c.h.bf16 %v92
  %v264 = vunpack.c.l.bf16 %v93
  %v265 = vunpack.c.h.bf16 %v93
  %v266 = vunpack.c.l.bf16 %v94
  %v267 = vunpack.c.h.bf16 %v94
  %v268 = vunpack.c.l.bf16 %v95
  %v269 = vunpack.c.h.bf16 %v95
  %v270 = vunpack.c.l.bf16 %v96
  %v271 = vunpack.c.h.bf16 %v96
  %v272 = vunpack.c.l.bf16 %v97
  %v273 = vunpack.c.h.bf16 %v97
  %v274 = vunpack.c.l.bf16 %v98
  %v275 = vunpack.c.h.bf16 %v98
  %v276 = vunpack.c.l.bf16 %v99
  %v277 = vunpack.c.h.bf16 %v99
  %v278 = vunpack.c.l.bf16 %v100
  %v279 = vunpack.c.h.bf16 %v100
  %v280 = vunpack.c.l.bf16 %v101
  %v281 = vunpack.c.h.bf16 %v101
  %v282 = vunpack.c.l.bf16 %v102
  %v283 = vunpack.c.h.bf16 %v102
  %v284 = vunpack.c.l.bf16 %v103
  %v285 = vunpack.c.h.bf16 %v103
  %v286 = vunpack.c.l.bf16 %v104
  %v287 = vunpack.c.h.bf16 %v104
  %v288 = vunpack.c.l.bf16 %v105
  %v289 = vunpack.c.h.bf16 %v105
  %v290 = vunpack.c.l.bf16 %v106
  %v291 = vunpack.c.h.bf16 %v106
  %v292 = vunpack.c.l.bf16 %v107
  %v293 = vunpack.c.h.bf16 %v107
  %v294 = vunpack.c.l.bf16 %v108
  %v295 = vunpack.c.h.bf16 %v108
  %v296 = vunpack.c.l.bf16 %v109
  %v297 = vunpack.c.h.bf16 %v109
  %v298 = vunpack.c.l.bf16 %v110
  %v299 = vunpack.c.h.bf16 %v110
  %v300 = vunpack.c.l.bf16 %v111
  %v301 = vunpack.c.h.bf16 %v111
  %v302 = vunpack.c.l.bf16 %v112
  %v303 = vunpack.c.h.bf16 %v112
  %v304 = vunpack.c.l.bf16 %v113
  %v305 = vunpack.c.h.bf16 %v113
  %v306 = vunpack.c.l.bf16 %v114
  %v307 = vunpack.c.h.bf16 %v114
  %v308 = vunpack.c.l.bf16 %v115
  %v309 = vunpack.c.h.bf16 %v115
  %v310 = vunpack.c.l.bf16 %v116
  %v311 = vunpack.c.h.bf16 %v116
  %v312 = vunpack.c.l.bf16 %v117
  %v313 = vunpack.c.h.bf16 %v117
  %v314 = vunpack.c.l.bf16 %v118
  %v315 = vunpack.c.h.bf16 %v118
  %v316 = vunpack.c.l.bf16 %v119
  %v317 = vunpack.c.h.bf16 %v119
  %v318 = vunpack.c.l.bf16 %v120
  %v319 = vunpack.c.h.bf16 %v120
  %v320 = vunpack.c.l.bf16 %v121
  %v321 = vunpack.c.h.bf16 %v121
  %v322 = vunpack.c.l.bf16 %v122
  %v323 = vunpack.c.h.bf16 %v122
  %v324 = vunpack.c.l.bf16 %v123
  %v325 = vunpack.c.h.bf16 %v123
  %v326 = vunpack.c.l.bf16 %v124
  %v327 = vunpack.c.h.bf16 %v124
  %v328 = vunpack.c.l.bf16 %v125
  %v329 = vunpack.c.h.bf16 %v125
  %v330 = vunpack.c.l.bf16 %v126
  %v331 = vunpack.c.h.bf16 %v126
  %v332 = vunpack.c.l.bf16 %v127
  %v333 = vunpack.c.h.bf16 %v127
  %v334 = vunpack.c.l.bf16 %v128
  %v335 = vunpack.c.h.bf16 %v128
  %v336 = vunpack.c.l.bf16 %v129
  %v337 = vunpack.c.h.bf16 %v129
  %v338 = vunpack.c.l.bf16 %v130
  %v339 = vunpack.c.h.bf16 %v130
  %v340 = vunpack.c.l.bf16 %v131
  %v341 = vunpack.c.h.bf16 %v131
  %v342 = vunpack.c.l.bf16 %v132
  %v343 = vunpack.c.h.bf16 %v132
  %v344 = vunpack.c.l.bf16 %v133
  %v345 = vunpack.c.h.bf16 %v133
  %v346 = vunpack.c.l.bf16 %v134
  %v347 = vunpack.c.h.bf16 %v134
  %v348 = vunpack.c.l.bf16 %v135
  %v349 = vunpack.c.h.bf16 %v135
  %v350 = vunpack.c.l.bf16 %v136
  %v351 = vunpack.c.h.bf16 %v136
  %v352 = vunpack.c.l.bf16 %v137
  %v353 = vunpack.c.h.bf16 %v137
  %v354 = vunpack.c.l.bf16 %v138
  %v355 = vunpack.c.h.bf16 %v138
  %v356 = vunpack.c.l.bf16 %v139
  %v357 = vunpack.c.h.bf16 %v139
  %v358 = vunpack.c.l.bf16 %v140
  %v359 = vunpack.c.h.bf16 %v140
  %v360 = vunpack.c.l.bf16 %v141
  %v361 = vunpack.c.h.bf16 %v141
  %v362 = vunpack.c.l.bf16 %v142
  %v363 = vunpack.c.h.bf16 %v142
  %v364 = vunpack.c.l.bf16 %v143
  %v365 = vunpack.c.h.bf16 %v143
  %v366 = vunpack.c.l.bf16 %v144
  %v367 = vunpack.c.h.bf16 %v144
  %v368 = vunpack.c.l.bf16 %v145
  %v369 = vunpack.c.h.bf16 %v145
  %v370 = vadd.f32 %v146, %v150
  %v371 = vadd.f32 %v370, %v154
  %v372 = vadd.f32 %v371, %v158
  %v373 = vadd.f32 %v372, %v162
  %v374 = vadd.f32 %v373, %v166
  %vm375 = vcmask 1040384
  %v376 = vsel %vm375, %v170, 0.0
  %v377 = vadd.f32 %v374, %v376
  %v378 = vrot.slane %v377, 4
  %v379 = vadd.f32 %v377, %v378
  %v380 = vrot.slane %v379, 2
  %v381 = vadd.f32 %v379, %v380
  %v382 = vrot.slane %v381, 1
  %v383 = vadd.f32 %v381, %v382
  %v384 = vadd.f32 %v147, %v151
  %v385 = vadd.f32 %v384, %v155
  %v386 = vadd.f32 %v385, %v159
  %v387 = vadd.f32 %v386, %v163
  %v388 = vadd.f32 %v387, %v167
  %v389 = vsel %vm375, %v171, 0.0
  %v390 = vadd.f32 %v388, %v389
  %v391 = vrot.slane %v390, 4
  %v392 = vadd.f32 %v390, %v391
  %v393 = vrot.slane %v392, 2
  %v394 = vadd.f32 %v392, %v393
  %v395 = vrot.slane %v394, 1
  %v396 = vadd.f32 %v394, %v395
  %v397 = vadd.f32 %v148, %v152
  %v398 = vadd.f32 %v397, %v156
  %v399 = vadd.f32 %v398, %v160
  %v400 = vadd.f32 %v399, %v164
  %v401 = vadd.f32 %v400, %v168
  %v402 = vsel %vm375, %v172, 0.0
  %v403 = vadd.f32 %v401, %v402
  %v404 = vrot.slane %v403, 4
  %v405 = vadd.f32 %v403, %v404
  %v406 = vrot.slane %v405, 2
  %v407 = vadd.f32 %v405, %v406
  %v408 = vrot.slane %v407, 1
  %v409 = vadd.f32 %v407, %v408
  %v410 = vadd.f32 %v149, %v153
  %v411 = vadd.f32 %v410, %v157
  %v412 = vadd.f32 %v411, %v161
  %v413 = vadd.f32 %v412, %v165
  %v414 = vadd.f32 %v413, %v169
  %v415 = vsel %vm375, %v173, 0.0
  %v416 = vadd.f32 %v414, %v415
  %v417 = vrot.slane %v416, 4
  %v418 = vadd.f32 %v416, %v417
  %v419 = vrot.slane %v418, 2
  %v420 = vadd.f32 %v418, %v419
  %v421 = vrot.slane %v420, 1
  %v422 = vadd.f32 %v420, %v421
  %v423 = vadd.f32 %v174, %v178
  %v424 = vadd.f32 %v423, %v182
  %v425 = vadd.f32 %v424, %v186
  %v426 = vadd.f32 %v425, %v190
  %v427 = vadd.f32 %v426, %v194
  %v428 = vsel %vm375, %v198, 0.0
  %v429 = vadd.f32 %v427, %v428
  %v430 = vrot.slane %v429, 4
  %v431 = vadd.f32 %v429, %v430
  %v432 = vrot.slane %v431, 2
  %v433 = vadd.f32 %v431, %v432
  %v434 = vrot.slane %v433, 1
  %v435 = vadd.f32 %v433, %v434
  %v436 = vadd.f32 %v175, %v179
  %v437 = vadd.f32 %v436, %v183
  %v438 = vadd.f32 %v437, %v187
  %v439 = vadd.f32 %v438, %v191
  %v440 = vadd.f32 %v439, %v195
  %v441 = vsel %vm375, %v199, 0.0
  %v442 = vadd.f32 %v440, %v441
  %v443 = vrot.slane %v442, 4
  %v444 = vadd.f32 %v442, %v443
  %v445 = vrot.slane %v444, 2
  %v446 = vadd.f32 %v444, %v445
  %v447 = vrot.slane %v446, 1
  %v448 = vadd.f32 %v446, %v447
  %v449 = vadd.f32 %v176, %v180
  %v450 = vadd.f32 %v449, %v184
  %v451 = vadd.f32 %v450, %v188
  %v452 = vadd.f32 %v451, %v192
  %v453 = vadd.f32 %v452, %v196
  %v454 = vsel %vm375, %v200, 0.0
  %v455 = vadd.f32 %v453, %v454
  %v456 = vrot.slane %v455, 4
  %v457 = vadd.f32 %v455, %v456
  %v458 = vrot.slane %v457, 2
  %v459 = vadd.f32 %v457, %v458
  %v460 = vrot.slane %v459, 1
  %v461 = vadd.f32 %v459, %v460
  %v462 = vadd.f32 %v177, %v181
  %v463 = vadd.f32 %v462, %v185
  %v464 = vadd.f32 %v463, %v189
  %v465 = vadd.f32 %v464, %v193
  %v466 = vadd.f32 %v465, %v197
  %v467 = vsel %vm375, %v201, 0.0
  %v468 = vadd.f32 %v466, %v467
  %v469 = vrot.slane %v468, 4
  %v470 = vadd.f32 %v468, %v469
  %v471 = vrot.slane %v470, 2
  %v472 = vadd.f32 %v470, %v471
  %v473 = vrot.slane %v472, 1
  %v474 = vadd.f32 %v472, %v473
  %v475 = vadd.f32 %v202, %v206
  %v476 = vadd.f32 %v475, %v210
  %v477 = vadd.f32 %v476, %v214
  %v478 = vadd.f32 %v477, %v218
  %v479 = vadd.f32 %v478, %v222
  %v480 = vsel %vm375, %v226, 0.0
  %v481 = vadd.f32 %v479, %v480
  %v482 = vrot.slane %v481, 4
  %v483 = vadd.f32 %v481, %v482
  %v484 = vrot.slane %v483, 2
  %v485 = vadd.f32 %v483, %v484
  %v486 = vrot.slane %v485, 1
  %v487 = vadd.f32 %v485, %v486
  %v488 = vadd.f32 %v203, %v207
  %v489 = vadd.f32 %v488, %v211
  %v490 = vadd.f32 %v489, %v215
  %v491 = vadd.f32 %v490, %v219
  %v492 = vadd.f32 %v491, %v223
  %v493 = vsel %vm375, %v227, 0.0
  %v494 = vadd.f32 %v492, %v493
  %v495 = vrot.slane %v494, 4
  %v496 = vadd.f32 %v494, %v495
  %v497 = vrot.slane %v496, 2
  %v498 = vadd.f32 %v496, %v497
  %v499 = vrot.slane %v498, 1
  %v500 = vadd.f32 %v498, %v499
  %v501 = vadd.f32 %v204, %v208
  %v502 = vadd.f32 %v501, %v212
  %v503 = vadd.f32 %v502, %v216
  %v504 = vadd.f32 %v503, %v220
  %v505 = vadd.f32 %v504, %v224
  %v506 = vsel %vm375, %v228, 0.0
  %v507 = vadd.f32 %v505, %v506
  %v508 = vrot.slane %v507, 4
  %v509 = vadd.f32 %v507, %v508
  %v510 = vrot.slane %v509, 2
  %v511 = vadd.f32 %v509, %v510
  %v512 = vrot.slane %v511, 1
  %v513 = vadd.f32 %v511, %v512
  %v514 = vadd.f32 %v205, %v209
  %v515 = vadd.f32 %v514, %v213
  %v516 = vadd.f32 %v515, %v217
  %v517 = vadd.f32 %v516, %v221
  %v518 = vadd.f32 %v517, %v225
  %v519 = vsel %vm375, %v229, 0.0
  %v520 = vadd.f32 %v518, %v519
  %v521 = vrot.slane %v520, 4
  %v522 = vadd.f32 %v520, %v521
  %v523 = vrot.slane %v522, 2
  %v524 = vadd.f32 %v522, %v523
  %v525 = vrot.slane %v524, 1
  %v526 = vadd.f32 %v524, %v525
  %v527 = vadd.f32 %v230, %v234
  %v528 = vadd.f32 %v527, %v238
  %v529 = vadd.f32 %v528, %v242
  %v530 = vadd.f32 %v529, %v246
  %v531 = vadd.f32 %v530, %v250
  %v532 = vsel %vm375, %v254, 0.0
  %v533 = vadd.f32 %v531, %v532
  %v534 = vrot.slane %v533, 4
  %v535 = vadd.f32 %v533, %v534
  %v536 = vrot.slane %v535, 2
  %v537 = vadd.f32 %v535, %v536
  %v538 = vrot.slane %v537, 1
  %v539 = vadd.f32 %v537, %v538
  %v540 = vadd.f32 %v231, %v235
  %v541 = vadd.f32 %v540, %v239
  %v542 = vadd.f32 %v541, %v243
  %v543 = vadd.f32 %v542, %v247
  %v544 = vadd.f32 %v543, %v251
  %v545 = vsel %vm375, %v255, 0.0
  %v546 = vadd.f32 %v544, %v545
  %v547 = vrot.slane %v546, 4
  %v548 = vadd.f32 %v546, %v547
  %v549 = vrot.slane %v548, 2
  %v550 = vadd.f32 %v548, %v549
  %v551 = vrot.slane %v550, 1
  %v552 = vadd.f32 %v550, %v551
  %v553 = vadd.f32 %v232, %v236
  %v554 = vadd.f32 %v553, %v240
  %v555 = vadd.f32 %v554, %v244
  %v556 = vadd.f32 %v555, %v248
  %v557 = vadd.f32 %v556, %v252
  %v558 = vsel %vm375, %v256, 0.0
  %v559 = vadd.f32 %v557, %v558
  %v560 = vrot.slane %v559, 4
  %v561 = vadd.f32 %v559, %v560
  %v562 = vrot.slane %v561, 2
  %v563 = vadd.f32 %v561, %v562
  %v564 = vrot.slane %v563, 1
  %v565 = vadd.f32 %v563, %v564
  %v566 = vadd.f32 %v233, %v237
  %v567 = vadd.f32 %v566, %v241
  %v568 = vadd.f32 %v567, %v245
  %v569 = vadd.f32 %v568, %v249
  %v570 = vadd.f32 %v569, %v253
  %v571 = vsel %vm375, %v257, 0.0
  %v572 = vadd.f32 %v570, %v571
  %v573 = vrot.slane %v572, 4
  %v574 = vadd.f32 %v572, %v573
  %v575 = vrot.slane %v574, 2
  %v576 = vadd.f32 %v574, %v575
  %v577 = vrot.slane %v576, 1
  %v578 = vadd.f32 %v576, %v577
  %v579 = vadd.f32 %v258, %v262
  %v580 = vadd.f32 %v579, %v266
  %v581 = vadd.f32 %v580, %v270
  %v582 = vadd.f32 %v581, %v274
  %v583 = vadd.f32 %v582, %v278
  %v584 = vsel %vm375, %v282, 0.0
  %v585 = vadd.f32 %v583, %v584
  %v586 = vrot.slane %v585, 4
  %v587 = vadd.f32 %v585, %v586
  %v588 = vrot.slane %v587, 2
  %v589 = vadd.f32 %v587, %v588
  %v590 = vrot.slane %v589, 1
  %v591 = vadd.f32 %v589, %v590
  %v592 = vadd.f32 %v259, %v263
  %v593 = vadd.f32 %v592, %v267
  %v594 = vadd.f32 %v593, %v271
  %v595 = vadd.f32 %v594, %v275
  %v596 = vadd.f32 %v595, %v279
  %v597 = vsel %vm375, %v283, 0.0
  %v598 = vadd.f32 %v596, %v597
  %v599 = vrot.slane %v598, 4
  %v600 = vadd.f32 %v598, %v599
  %v601 = vrot.slane %v600, 2
  %v602 = vadd.f32 %v600, %v601
  %v603 = vrot.slane %v602, 1
  %v604 = vadd.f32 %v602, %v603
  %v605 = vadd.f32 %v260, %v264
  %v606 = vadd.f32 %v605, %v268
  %v607 = vadd.f32 %v606, %v272
  %v608 = vadd.f32 %v607, %v276
  %v609 = vadd.f32 %v608, %v280
  %v610 = vsel %vm375, %v284, 0.0
  %v611 = vadd.f32 %v609, %v610
  %v612 = vrot.slane %v611, 4
  %v613 = vadd.f32 %v611, %v612
  %v614 = vrot.slane %v613, 2
  %v615 = vadd.f32 %v613, %v614
  %v616 = vrot.slane %v615, 1
  %v617 = vadd.f32 %v615, %v616
  %v618 = vadd.f32 %v261, %v265
  %v619 = vadd.f32 %v618, %v269
  %v620 = vadd.f32 %v619, %v273
  %v621 = vadd.f32 %v620, %v277
  %v622 = vadd.f32 %v621, %v281
  %v623 = vsel %vm375, %v285, 0.0
  %v624 = vadd.f32 %v622, %v623
  %v625 = vrot.slane %v624, 4
  %v626 = vadd.f32 %v624, %v625
  %v627 = vrot.slane %v626, 2
  %v628 = vadd.f32 %v626, %v627
  %v629 = vrot.slane %v628, 1
  %v630 = vadd.f32 %v628, %v629
  %v631 = vadd.f32 %v286, %v290
  %v632 = vadd.f32 %v631, %v294
  %v633 = vadd.f32 %v632, %v298
  %v634 = vadd.f32 %v633, %v302
  %v635 = vadd.f32 %v634, %v306
  %v636 = vsel %vm375, %v310, 0.0
  %v637 = vadd.f32 %v635, %v636
  %v638 = vrot.slane %v637, 4
  %v639 = vadd.f32 %v637, %v638
  %v640 = vrot.slane %v639, 2
  %v641 = vadd.f32 %v639, %v640
  %v642 = vrot.slane %v641, 1
  %v643 = vadd.f32 %v641, %v642
  %v644 = vadd.f32 %v287, %v291
  %v645 = vadd.f32 %v644, %v295
  %v646 = vadd.f32 %v645, %v299
  %v647 = vadd.f32 %v646, %v303
  %v648 = vadd.f32 %v647, %v307
  %v649 = vsel %vm375, %v311, 0.0
  %v650 = vadd.f32 %v648, %v649
  %v651 = vrot.slane %v650, 4
  %v652 = vadd.f32 %v650, %v651
  %v653 = vrot.slane %v652, 2
  %v654 = vadd.f32 %v652, %v653
  %v655 = vrot.slane %v654, 1
  %v656 = vadd.f32 %v654, %v655
  %v657 = vadd.f32 %v288, %v292
  %v658 = vadd.f32 %v657, %v296
  %v659 = vadd.f32 %v658, %v300
  %v660 = vadd.f32 %v659, %v304
  %v661 = vadd.f32 %v660, %v308
  %v662 = vsel %vm375, %v312, 0.0
  %v663 = vadd.f32 %v661, %v662
  %v664 = vrot.slane %v663, 4
  %v665 = vadd.f32 %v663, %v664
  %v666 = vrot.slane %v665, 2
  %v667 = vadd.f32 %v665, %v666
  %v668 = vrot.slane %v667, 1
  %v669 = vadd.f32 %v667, %v668
  %v670 = vadd.f32 %v289, %v293
  %v671 = vadd.f32 %v670, %v297
  %v672 = vadd.f32 %v671, %v301
  %v673 = vadd.f32 %v672, %v305
  %v674 = vadd.f32 %v673, %v309
  %v675 = vsel %vm375, %v313, 0.0
  %v676 = vadd.f32 %v674, %v675
  %v677 = vrot.slane %v676, 4
  %v678 = vadd.f32 %v676, %v677
  %v679 = vrot.slane %v678, 2
  %v680 = vadd.f32 %v678, %v679
  %v681 = vrot.slane %v680, 1
  %v682 = vadd.f32 %v680, %v681
  %v683 = vadd.f32 %v314, %v318
  %v684 = vadd.f32 %v683, %v322
  %v685 = vadd.f32 %v684, %v326
  %v686 = vadd.f32 %v685, %v330
  %v687 = vadd.f32 %v686, %v334
  %v688 = vsel %vm375, %v338, 0.0
  %v689 = vadd.f32 %v687, %v688
  %v690 = vrot.slane %v689, 4
  %v691 = vadd.f32 %v689, %v690
  %v692 = vrot.slane %v691, 2
  %v693 = vadd.f32 %v691, %v692
  %v694 = vrot.slane %v693, 1
  %v695 = vadd.f32 %v693, %v694
  %v696 = vadd.f32 %v315, %v319
  %v697 = vadd.f32 %v696, %v323
  %v698 = vadd.f32 %v697, %v327
  %v699 = vadd.f32 %v698, %v331
  %v700 = vadd.f32 %v699, %v335
  %v701 = vsel %vm375, %v339, 0.0
  %v702 = vadd.f32 %v700, %v701
  %v703 = vrot.slane %v702, 4
  %v704 = vadd.f32 %v702, %v703
  %v705 = vrot.slane %v704, 2
  %v706 = vadd.f32 %v704, %v705
  %v707 = vrot.slane %v706, 1
  %v708 = vadd.f32 %v706, %v707
  %v709 = vadd.f32 %v316, %v320
  %v710 = vadd.f32 %v709, %v324
  %v711 = vadd.f32 %v710, %v328
  %v712 = vadd.f32 %v711, %v332
  %v713 = vadd.f32 %v712, %v336
  %v714 = vsel %vm375, %v340, 0.0
  %v715 = vadd.f32 %v713, %v714
  %v716 = vrot.slane %v715, 4
  %v717 = vadd.f32 %v715, %v716
  %v718 = vrot.slane %v717, 2
  %v719 = vadd.f32 %v717, %v718
  %v720 = vrot.slane %v719, 1
  %v721 = vadd.f32 %v719, %v720
  %v722 = vadd.f32 %v317, %v321
  %v723 = vadd.f32 %v722, %v325
  %v724 = vadd.f32 %v723, %v329
  %v725 = vadd.f32 %v724, %v333
  %v726 = vadd.f32 %v725, %v337
  %v727 = vsel %vm375, %v341, 0.0
  %v728 = vadd.f32 %v726, %v727
  %v729 = vrot.slane %v728, 4
  %v730 = vadd.f32 %v728, %v729
  %v731 = vrot.slane %v730, 2
  %v732 = vadd.f32 %v730, %v731
  %v733 = vrot.slane %v732, 1
  %v734 = vadd.f32 %v732, %v733
  %v735 = vadd.f32 %v342, %v346
  %v736 = vadd.f32 %v735, %v350
  %v737 = vadd.f32 %v736, %v354
  %v738 = vadd.f32 %v737, %v358
  %v739 = vadd.f32 %v738, %v362
  %v740 = vsel %vm375, %v366, 0.0
  %v741 = vadd.f32 %v739, %v740
  %v742 = vrot.slane %v741, 4
  %v743 = vadd.f32 %v741, %v742
  %v744 = vrot.slane %v743, 2
  %v745 = vadd.f32 %v743, %v744
  %v746 = vrot.slane %v745, 1
  %v747 = vadd.f32 %v745, %v746
  %v748 = vadd.f32 %v343, %v347
  %v749 = vadd.f32 %v748, %v351
  %v750 = vadd.f32 %v749, %v355
  %v751 = vadd.f32 %v750, %v359
  %v752 = vadd.f32 %v751, %v363
  %v753 = vsel %vm375, %v367, 0.0
  %v754 = vadd.f32 %v752, %v753
  %v755 = vrot.slane %v754, 4
  %v756 = vadd.f32 %v754, %v755
  %v757 = vrot.slane %v756, 2
  %v758 = vadd.f32 %v756, %v757
  %v759 = vrot.slane %v758, 1
  %v760 = vadd.f32 %v758, %v759
  %v761 = vadd.f32 %v344, %v348
  %v762 = vadd.f32 %v761, %v352
  %v763 = vadd.f32 %v762, %v356
  %v764 = vadd.f32 %v763, %v360
  %v765 = vadd.f32 %v764, %v364
  %v766 = vsel %vm375, %v368, 0.0
  %v767 = vadd.f32 %v765, %v766
  %v768 = vrot.slane %v767, 4
  %v769 = vadd.f32 %v767, %v768
  %v770 = vrot.slane %v769, 2
  %v771 = vadd.f32 %v769, %v770
  %v772 = vrot.slane %v771, 1
  %v773 = vadd.f32 %v771, %v772
  %v774 = vadd.f32 %v345, %v349
  %v775 = vadd.f32 %v774, %v353
  %v776 = vadd.f32 %v775, %v357
  %v777 = vadd.f32 %v776, %v361
  %v778 = vadd.f32 %v777, %v365
  %v779 = vsel %vm375, %v369, 0.0
  %v780 = vadd.f32 %v778, %v779
  %v781 = vrot.slane %v780, 4
  %v782 = vadd.f32 %v780, %v781
  %v783 = vrot.slane %v782, 2
  %v784 = vadd.f32 %v782, %v783
  %v785 = vrot.slane %v784, 1
  %v786 = vadd.f32 %v784, %v785
  %s787 = sld [smem:[#allocation2]]
  %s788 = sld [smem:[#allocation3]]
  %v789 = vld [vmem:[%s1] sm:$0xff]
  %v790 = vld [vmem:[%s1 + $0x8] sm:$0xff]
  %v791 = vld [vmem:[%s1 + $0x10] sm:$0xff]
  %v792 = vld [vmem:[%s1 + $0x18] sm:$0xff]
  %v793 = vld [vmem:[%s1 + $0x20] sm:$0xff]
  %v794 = vld [vmem:[%s1 + $0x28] sm:$0xff]
  %v795 = vld [vmem:[%s1 + $0x30] sm:$0xff]
  %v796 = vld [vmem:[%s1 + $0x38] sm:$0xff]
  %v797 = vld [vmem:[%s1 + $0x40] sm:$0xff]
  %v798 = vld [vmem:[%s1 + $0x48] sm:$0xff]
  %v799 = vld [vmem:[%s1 + $0x50] sm:$0xff]
  %v800 = vld [vmem:[%s1 + $0x58] sm:$0xff]
  %v801 = vld [vmem:[%s1 + $0x60] sm:$0xff]
  %v802 = vld [vmem:[%s1 + $0x68] sm:$0xff]
  %v803 = vld [vmem:[%s1 + $0x70] sm:$0xff]
  %v804 = vld [vmem:[%s1 + $0x78] sm:$0xff]
  %v805 = vld [vmem:[%s1 + $0x80] sm:$0xff]
  %v806 = vld [vmem:[%s1 + $0x88] sm:$0xff]
  %v807 = vld [vmem:[%s1 + $0x90] sm:$0xff]
  %v808 = vld [vmem:[%s1 + $0x98] sm:$0xff]
  %v809 = vld [vmem:[%s1 + $0xa0] sm:$0xff]
  %v810 = vld [vmem:[%s1 + $0xa8] sm:$0xff]
  %v811 = vld [vmem:[%s1 + $0xb0] sm:$0xff]
  %v812 = vld [vmem:[%s1 + $0xb8] sm:$0xff]
  %v813 = vld [vmem:[%s1 + $0xc0] sm:$0xff]
  %v814 = vld [vmem:[%s1 + $0xc8] sm:$0xff]
  %v815 = vld [vmem:[%s1 + $0xd0] sm:$0xff]
  %v816 = vld [vmem:[%s1 + $0xd8] sm:$0xff]
  %v817 = vld [vmem:[%s1 + $0xe0] sm:$0xff]
  %v818 = vld [vmem:[%s1 + $0xe8] sm:$0xff]
  %v819 = vld [vmem:[%s1 + $0xf0] sm:$0xff]
  %v820 = vld [vmem:[%s1 + $0xf8] sm:$0xff]
  %v821 = vld [vmem:[%s1 + $0x100] sm:$0xff]
  %v822 = vld [vmem:[%s1 + $0x108] sm:$0xff]
  %v823 = vld [vmem:[%s1 + $0x110] sm:$0xff]
  %v824 = vld [vmem:[%s1 + $0x118] sm:$0xff]
  %v825 = vld [vmem:[%s1 + $0x120] sm:$0xff]
  %v826 = vld [vmem:[%s1 + $0x128] sm:$0xff]
  %v827 = vld [vmem:[%s1 + $0x130] sm:$0xff]
  %v828 = vld [vmem:[%s1 + $0x138] sm:$0xff]
  %v829 = vld [vmem:[%s1 + $0x140] sm:$0xff]
  %v830 = vld [vmem:[%s1 + $0x148] sm:$0xff]
  %v831 = vld [vmem:[%s1 + $0x150] sm:$0xff]
  %v832 = vld [vmem:[%s1 + $0x158] sm:$0xff]
  %v833 = vld [vmem:[%s1 + $0x160] sm:$0xff]
  %v834 = vld [vmem:[%s1 + $0x168] sm:$0xff]
  %v835 = vld [vmem:[%s1 + $0x170] sm:$0xff]
  %v836 = vld [vmem:[%s1 + $0x178] sm:$0xff]
  %v837 = vld [vmem:[%s1 + $0x180] sm:$0xff]
  %v838 = vld [vmem:[%s1 + $0x188] sm:$0xff]
  %v839 = vld [vmem:[%s1 + $0x190] sm:$0xff]
  %v840 = vld [vmem:[%s1 + $0x198] sm:$0xff]
  %v841 = vld [vmem:[%s1 + $0x1a0] sm:$0xff]
  %v842 = vld [vmem:[%s1 + $0x1a8] sm:$0xff]
  %v843 = vld [vmem:[%s1 + $0x1b0] sm:$0xff]
  %v844 = vld [vmem:[%s1 + $0x1b8] sm:$0xff]
  %v845 = vld [vmem:[%s1 + $0x1c0] sm:$0xff]
  %v846 = vld [vmem:[%s1 + $0x1c8] sm:$0xff]
  %v847 = vld [vmem:[%s1 + $0x1d0] sm:$0xff]
  %v848 = vld [vmem:[%s1 + $0x1d8] sm:$0xff]
  %v849 = vld [vmem:[%s1 + $0x1e0] sm:$0xff]
  %v850 = vld [vmem:[%s1 + $0x1e8] sm:$0xff]
  %v851 = vld [vmem:[%s1 + $0x1f0] sm:$0xff]
  %v852 = vld [vmem:[%s1 + $0x1f8] sm:$0xff]
  %v853 = vld [vmem:[%s1 + $0x200] sm:$0xff]
  %v854 = vld [vmem:[%s1 + $0x208] sm:$0xff]
  %v855 = vld [vmem:[%s1 + $0x210] sm:$0xff]
  %v856 = vld [vmem:[%s1 + $0x218] sm:$0xff]
  %v857 = vld [vmem:[%s1 + $0x220] sm:$0xff]
  %v858 = vld [vmem:[%s1 + $0x228] sm:$0xff]
  %v859 = vld [vmem:[%s1 + $0x230] sm:$0xff]
  %v860 = vld [vmem:[%s1 + $0x238] sm:$0xff]
  %v861 = vld [vmem:[%s1 + $0x240] sm:$0xff]
  %v862 = vld [vmem:[%s1 + $0x248] sm:$0xff]
  %v863 = vld [vmem:[%s1 + $0x250] sm:$0xff]
  %v864 = vld [vmem:[%s1 + $0x258] sm:$0xff]
  %v865 = vld [vmem:[%s1 + $0x260] sm:$0xff]
  %v866 = vld [vmem:[%s1 + $0x268] sm:$0xff]
  %v867 = vld [vmem:[%s1 + $0x270] sm:$0xff]
  %v868 = vld [vmem:[%s1 + $0x278] sm:$0xff]
  %v869 = vld [vmem:[%s1 + $0x280] sm:$0xff]
  %v870 = vld [vmem:[%s1 + $0x288] sm:$0xff]
  %v871 = vld [vmem:[%s1 + $0x290] sm:$0xff]
  %v872 = vld [vmem:[%s1 + $0x298] sm:$0xff]
  %v873 = vld [vmem:[%s1 + $0x2a0] sm:$0xff]
  %v874 = vld [vmem:[%s1 + $0x2a8] sm:$0xff]
  %v875 = vld [vmem:[%s1 + $0x2b0] sm:$0xff]
  %v876 = vld [vmem:[%s1 + $0x2b8] sm:$0xff]
  %v877 = vld [vmem:[%s1 + $0x2c0] sm:$0xff]
  %v878 = vld [vmem:[%s1 + $0x2c8] sm:$0xff]
  %v879 = vld [vmem:[%s1 + $0x2d0] sm:$0xff]
  %v880 = vld [vmem:[%s1 + $0x2d8] sm:$0xff]
  %v881 = vld [vmem:[%s1 + $0x2e0] sm:$0xff]
  %v882 = vld [vmem:[%s1 + $0x2e8] sm:$0xff]
  %v883 = vld [vmem:[%s1 + $0x2f0] sm:$0xff]
  %v884 = vld [vmem:[%s1 + $0x2f8] sm:$0xff]
  %v885 = vld [vmem:[%s1 + $0x300] sm:$0xff]
  %v886 = vld [vmem:[%s1 + $0x308] sm:$0xff]
  %v887 = vld [vmem:[%s1 + $0x310] sm:$0xff]
  %v888 = vld [vmem:[%s1 + $0x318] sm:$0xff]
  %v889 = vld [vmem:[%s1 + $0x320] sm:$0xff]
  %v890 = vld [vmem:[%s1 + $0x328] sm:$0xff]
  %v891 = vld [vmem:[%s1 + $0x330] sm:$0xff]
  %v892 = vld [vmem:[%s1 + $0x338] sm:$0xff]
  %v893 = vld [vmem:[%s1 + $0x340] sm:$0xff]
  %v894 = vld [vmem:[%s1 + $0x348] sm:$0xff]
  %v895 = vld [vmem:[%s1 + $0x350] sm:$0xff]
  %v896 = vld [vmem:[%s1 + $0x358] sm:$0xff]
  %v897 = vld [vmem:[%s1 + $0x360] sm:$0xff]
  %v898 = vld [vmem:[%s1 + $0x368] sm:$0xff]
  %v899 = vld [vmem:[%s1 + $0x370] sm:$0xff]
  %v900 = vld [vmem:[%s1 + $0x378] sm:$0xff]
  %v901 = vld [vmem:[%s1 + $0x380] sm:$0xff]
  %v902 = vld [vmem:[%s1 + $0x388] sm:$0xff]
  %v903 = vld [vmem:[%s1 + $0x390] sm:$0xff]
  %v904 = vld [vmem:[%s1 + $0x398] sm:$0xff]
  %v905 = vld [vmem:[%s1 + $0x3a0] sm:$0xff]
  %v906 = vld [vmem:[%s1 + $0x3a8] sm:$0xff]
  %v907 = vld [vmem:[%s1 + $0x3b0] sm:$0xff]
  %v908 = vld [vmem:[%s1 + $0x3b8] sm:$0xff]
  %v909 = vld [vmem:[%s1 + $0x3c0] sm:$0xff]
  %v910 = vld [vmem:[%s1 + $0x3c8] sm:$0xff]
  %v911 = vld [vmem:[%s1 + $0x3d0] sm:$0xff]
  %v912 = vld [vmem:[%s1 + $0x3d8] sm:$0xff]
  %v913 = vld [vmem:[%s1 + $0x3e0] sm:$0xff]
  %v914 = vld [vmem:[%s1 + $0x3e8] sm:$0xff]
  %v915 = vld [vmem:[%s1 + $0x3f0] sm:$0xff]
  %v916 = vld [vmem:[%s1 + $0x3f8] sm:$0xff]
  %v917 = vld [vmem:[%s2] sm:$0x3]
  %v919 = vperm.slane %v917, 0
  %v920 = vperm.slane %v917, 1
  %vm955 = vcmask 1041409
  %v956 = vsel %vm955, %v435, %v383
  %vm957 = vcmask 1042434
  %v958 = vsel %vm957, %v487, %v956
  %vm959 = vcmask 1043459
  %v960 = vsel %vm959, %v539, %v958
  %vm961 = vcmask 1044484
  %v962 = vsel %vm961, %v591, %v960
  %vm963 = vcmask 1045509
  %v964 = vsel %vm963, %v643, %v962
  %vm965 = vcmask 1046534
  %v966 = vsel %vm965, %v695, %v964
  %vm967 = vcmask 1047559
  %v968 = vsel %vm967, %v747, %v966
  %v969 = vsel %vm955, %v448, %v396
  %v970 = vsel %vm957, %v500, %v969
  %v971 = vsel %vm959, %v552, %v970
  %v972 = vsel %vm961, %v604, %v971
  %v973 = vsel %vm963, %v656, %v972
  %v974 = vsel %vm965, %v708, %v973
  %v975 = vsel %vm967, %v760, %v974
  %v976 = vsel %vm955, %v461, %v409
  %v977 = vsel %vm957, %v513, %v976
  %v978 = vsel %vm959, %v565, %v977
  %v979 = vsel %vm961, %v617, %v978
  %v980 = vsel %vm963, %v669, %v979
  %v981 = vsel %vm965, %v721, %v980
  %v982 = vsel %vm967, %v773, %v981
  %v983 = vsel %vm955, %v474, %v422
  %v984 = vsel %vm957, %v526, %v983
  %v985 = vsel %vm959, %v578, %v984
  %v986 = vsel %vm961, %v630, %v985
  %v987 = vsel %vm963, %v682, %v986
  %v988 = vsel %vm965, %v734, %v987
  %v989 = vsel %vm967, %v786, %v988
  %994 = vmatpush.msra.mxu0 %v819
  %995 = vmatpush.msra.mxu0 %v817
  %996 = vmatpush.msra.mxu0 %v815
  %997 = vmatpush.msra.mxu0 %v813
  %998 = vmatpush.msra.mxu0 %v811
  %999 = vmatpush.msra.mxu0 %v809
  %1000 = vmatpush.msra.mxu0 %v807
  %1001 = vmatpush.msra.mxu0 %v805
  %1002 = vmatpush.msra.mxu0 %v803
  %1003 = vmatpush.msra.mxu0 %v801
  %1004 = vmatpush.msra.mxu0 %v799
  %1005 = vmatpush.msra.mxu0 %v797
  %1006 = vmatpush.msra.mxu0 %v795
  %1007 = vmatpush.msra.mxu0 %v793
  %1008 = vmatpush.msra.mxu0 %v791
  %1009 = vmatpush.msra.mxu0 %v789
  %1010 = vmatmul.f32.gmra.mxu0 %v968
  %v1011 = vpop.f32.mrf.mxu0
  %v1012 = vadd.f32 %v919, %v1011
  %1013 = vdwg.mxu0
  %1014 = vmatpush.msra.mxu0 %v851
  %1015 = vmatpush.msra.mxu0 %v849
  %1016 = vmatpush.msra.mxu0 %v847
  %1017 = vmatpush.msra.mxu0 %v845
  %1018 = vmatpush.msra.mxu0 %v843
  %1019 = vmatpush.msra.mxu0 %v841
  %1020 = vmatpush.msra.mxu0 %v839
  %1021 = vmatpush.msra.mxu0 %v837
  %1022 = vmatpush.msra.mxu0 %v835
  %1023 = vmatpush.msra.mxu0 %v833
  %1024 = vmatpush.msra.mxu0 %v831
  %1025 = vmatpush.msra.mxu0 %v829
  %1026 = vmatpush.msra.mxu0 %v827
  %1027 = vmatpush.msra.mxu0 %v825
  %1028 = vmatpush.msra.mxu0 %v823
  %1029 = vmatpush.msra.mxu0 %v821
  %1030 = vmatmul.f32.gmra.mxu0 %v975
  %v1031 = vpop.f32.mrf.mxu0
  %v1032 = vadd.f32 %v1012, %v1031
  %1033 = vdwg.mxu0
  %1034 = vmatpush.msra.mxu0 %v883
  %1035 = vmatpush.msra.mxu0 %v881
  %1036 = vmatpush.msra.mxu0 %v879
  %1037 = vmatpush.msra.mxu0 %v877
  %1038 = vmatpush.msra.mxu0 %v875
  %1039 = vmatpush.msra.mxu0 %v873
  %1040 = vmatpush.msra.mxu0 %v871
  %1041 = vmatpush.msra.mxu0 %v869
  %1042 = vmatpush.msra.mxu0 %v867
  %1043 = vmatpush.msra.mxu0 %v865
  %1044 = vmatpush.msra.mxu0 %v863
  %1045 = vmatpush.msra.mxu0 %v861
  %1046 = vmatpush.msra.mxu0 %v859
  %1047 = vmatpush.msra.mxu0 %v857
  %1048 = vmatpush.msra.mxu0 %v855
  %1049 = vmatpush.msra.mxu0 %v853
  %1050 = vmatmul.f32.gmra.mxu0 %v982
  %v1051 = vpop.f32.mrf.mxu0
  %v1052 = vadd.f32 %v1032, %v1051
  %1053 = vdwg.mxu0
  %1054 = vmatpush.msra.mxu0 %v915
  %1055 = vmatpush.msra.mxu0 %v913
  %1056 = vmatpush.msra.mxu0 %v911
  %1057 = vmatpush.msra.mxu0 %v909
  %1058 = vmatpush.msra.mxu0 %v907
  %1059 = vmatpush.msra.mxu0 %v905
  %1060 = vmatpush.msra.mxu0 %v903
  %1061 = vmatpush.msra.mxu0 %v901
  %1062 = vmatpush.msra.mxu0 %v899
  %1063 = vmatpush.msra.mxu0 %v897
  %1064 = vmatpush.msra.mxu0 %v895
  %1065 = vmatpush.msra.mxu0 %v893
  %1066 = vmatpush.msra.mxu0 %v891
  %1067 = vmatpush.msra.mxu0 %v889
  %1068 = vmatpush.msra.mxu0 %v887
  %1069 = vmatpush.msra.mxu0 %v885
  %1070 = vmatmul.f32.gmra.mxu0 %v989
  %v1071 = vpop.f32.mrf.mxu0
  %v1072 = vadd.f32 %v1052, %v1071
  %1073 = vdwg.mxu0
  %1074 = vmatpush.msra.mxu0 %v820
  %1075 = vmatpush.msra.mxu0 %v818
  %1076 = vmatpush.msra.mxu0 %v816
  %1077 = vmatpush.msra.mxu0 %v814
  %1078 = vmatpush.msra.mxu0 %v812
  %1079 = vmatpush.msra.mxu0 %v810
  %1080 = vmatpush.msra.mxu0 %v808
  %1081 = vmatpush.msra.mxu0 %v806
  %1082 = vmatpush.msra.mxu0 %v804
  %1083 = vmatpush.msra.mxu0 %v802
  %1084 = vmatpush.msra.mxu0 %v800
  %1085 = vmatpush.msra.mxu0 %v798
  %1086 = vmatpush.msra.mxu0 %v796
  %1087 = vmatpush.msra.mxu0 %v794
  %1088 = vmatpush.msra.mxu0 %v792
  %1089 = vmatpush.msra.mxu0 %v790
  %1090 = vmatmul.f32.gmra.mxu0 %v968
  %v1091 = vpop.f32.mrf.mxu0
  %v1092 = vadd.f32 %v920, %v1091
  %1093 = vdwg.mxu0
  %1094 = vmatpush.msra.mxu0 %v852
  %1095 = vmatpush.msra.mxu0 %v850
  %1096 = vmatpush.msra.mxu0 %v848
  %1097 = vmatpush.msra.mxu0 %v846
  %1098 = vmatpush.msra.mxu0 %v844
  %1099 = vmatpush.msra.mxu0 %v842
  %1100 = vmatpush.msra.mxu0 %v840
  %1101 = vmatpush.msra.mxu0 %v838
  %1102 = vmatpush.msra.mxu0 %v836
  %1103 = vmatpush.msra.mxu0 %v834
  %1104 = vmatpush.msra.mxu0 %v832
  %1105 = vmatpush.msra.mxu0 %v830
  %1106 = vmatpush.msra.mxu0 %v828
  %1107 = vmatpush.msra.mxu0 %v826
  %1108 = vmatpush.msra.mxu0 %v824
  %1109 = vmatpush.msra.mxu0 %v822
  %1110 = vmatmul.f32.gmra.mxu0 %v975
  %v1111 = vpop.f32.mrf.mxu0
  %v1112 = vadd.f32 %v1092, %v1111
  %1113 = vdwg.mxu0
  %1114 = vmatpush.msra.mxu0 %v884
  %1115 = vmatpush.msra.mxu0 %v882
  %1116 = vmatpush.msra.mxu0 %v880
  %1117 = vmatpush.msra.mxu0 %v878
  %1118 = vmatpush.msra.mxu0 %v876
  %1119 = vmatpush.msra.mxu0 %v874
  %1120 = vmatpush.msra.mxu0 %v872
  %1121 = vmatpush.msra.mxu0 %v870
  %1122 = vmatpush.msra.mxu0 %v868
  %1123 = vmatpush.msra.mxu0 %v866
  %1124 = vmatpush.msra.mxu0 %v864
  %1125 = vmatpush.msra.mxu0 %v862
  %1126 = vmatpush.msra.mxu0 %v860
  %1127 = vmatpush.msra.mxu0 %v858
  %1128 = vmatpush.msra.mxu0 %v856
  %1129 = vmatpush.msra.mxu0 %v854
  %1130 = vmatmul.f32.gmra.mxu0 %v982
  %v1131 = vpop.f32.mrf.mxu0
  %v1132 = vadd.f32 %v1112, %v1131
  %1133 = vdwg.mxu0
  %1134 = vmatpush.msra.mxu0 %v916
  %1135 = vmatpush.msra.mxu0 %v914
  %1136 = vmatpush.msra.mxu0 %v912
  %1137 = vmatpush.msra.mxu0 %v910
  %1138 = vmatpush.msra.mxu0 %v908
  %1139 = vmatpush.msra.mxu0 %v906
  %1140 = vmatpush.msra.mxu0 %v904
  %1141 = vmatpush.msra.mxu0 %v902
  %1142 = vmatpush.msra.mxu0 %v900
  %1143 = vmatpush.msra.mxu0 %v898
  %1144 = vmatpush.msra.mxu0 %v896
  %1145 = vmatpush.msra.mxu0 %v894
  %1146 = vmatpush.msra.mxu0 %v892
  %1147 = vmatpush.msra.mxu0 %v890
  %1148 = vmatpush.msra.mxu0 %v888
  %1149 = vmatpush.msra.mxu0 %v886
  %1150 = vmatmul.f32.gmra.mxu0 %v989
  %v1151 = vpop.f32.mrf.mxu0
  %v1152 = vadd.f32 %v1132, %v1151
  %1153 = vdwg.mxu0
  %vm1154 = vcmp.ge.f32.partialorder %v1072, 0.0
  %vm1155 = vcmp.ge.f32.partialorder %v1152, 0.0
  %v1156 = vstv %s787
  %v1157 = vmul.f32 %v1156, %v1072
  %v1158 = vmul.f32 %v1156, %v1152
  %v1159 = vsel %vm1154, %v1072, %v1157
  %v1160 = vsel %vm1155, %v1152, %v1158
  %v1161 = vld [vmem:[%s3] sm:$0xff]
  %v1162 = vld [vmem:[%s3 + $0x8] sm:$0xff]
  %v1163 = vld [vmem:[%s3 + $0x10] sm:$0xff]
  %v1164 = vld [vmem:[%s3 + $0x18] sm:$0xff]
  %v1165 = vld [vmem:[%s3 + $0x20] sm:$0xff]
  %v1166 = vld [vmem:[%s3 + $0x28] sm:$0xff]
  %v1167 = vld [vmem:[%s3 + $0x30] sm:$0xff]
  %v1168 = vld [vmem:[%s3 + $0x38] sm:$0xff]
  %v1169 = vld [vmem:[%s3 + $0x40] sm:$0xff]
  %v1170 = vld [vmem:[%s3 + $0x48] sm:$0xff]
  %v1171 = vld [vmem:[%s3 + $0x50] sm:$0xff]
  %v1172 = vld [vmem:[%s3 + $0x58] sm:$0xff]
  %v1173 = vld [vmem:[%s3 + $0x60] sm:$0xff]
  %v1174 = vld [vmem:[%s3 + $0x68] sm:$0xff]
  %v1175 = vld [vmem:[%s3 + $0x70] sm:$0xff]
  %v1176 = vld [vmem:[%s3 + $0x78] sm:$0xff]
  %v1177 = vld [vmem:[%s3 + $0x80] sm:$0xff]
  %v1178 = vld [vmem:[%s3 + $0x88] sm:$0xff]
  %v1179 = vld [vmem:[%s3 + $0x90] sm:$0xff]
  %v1180 = vld [vmem:[%s3 + $0x98] sm:$0xff]
  %v1181 = vld [vmem:[%s3 + $0xa0] sm:$0xff]
  %v1182 = vld [vmem:[%s3 + $0xa8] sm:$0xff]
  %v1183 = vld [vmem:[%s3 + $0xb0] sm:$0xff]
  %v1184 = vld [vmem:[%s3 + $0xb8] sm:$0xff]
  %v1185 = vld [vmem:[%s3 + $0xc0] sm:$0xff]
  %v1186 = vld [vmem:[%s3 + $0xc8] sm:$0xff]
  %v1187 = vld [vmem:[%s3 + $0xd0] sm:$0xff]
  %v1188 = vld [vmem:[%s3 + $0xd8] sm:$0xff]
  %v1189 = vld [vmem:[%s3 + $0xe0] sm:$0xff]
  %v1190 = vld [vmem:[%s3 + $0xe8] sm:$0xff]
  %v1191 = vld [vmem:[%s3 + $0xf0] sm:$0xff]
  %v1192 = vld [vmem:[%s3 + $0xf8] sm:$0xff]
  %v1193 = vld [vmem:[%s3 + $0x100] sm:$0xff]
  %v1194 = vld [vmem:[%s3 + $0x108] sm:$0xff]
  %v1195 = vld [vmem:[%s3 + $0x110] sm:$0xff]
  %v1196 = vld [vmem:[%s3 + $0x118] sm:$0xff]
  %v1197 = vld [vmem:[%s3 + $0x120] sm:$0xff]
  %v1198 = vld [vmem:[%s3 + $0x128] sm:$0xff]
  %v1199 = vld [vmem:[%s3 + $0x130] sm:$0xff]
  %v1200 = vld [vmem:[%s3 + $0x138] sm:$0xff]
  %v1201 = vld [vmem:[%s3 + $0x140] sm:$0xff]
  %v1202 = vld [vmem:[%s3 + $0x148] sm:$0xff]
  %v1203 = vld [vmem:[%s3 + $0x150] sm:$0xff]
  %v1204 = vld [vmem:[%s3 + $0x158] sm:$0xff]
  %v1205 = vld [vmem:[%s3 + $0x160] sm:$0xff]
  %v1206 = vld [vmem:[%s3 + $0x168] sm:$0xff]
  %v1207 = vld [vmem:[%s3 + $0x170] sm:$0xff]
  %v1208 = vld [vmem:[%s3 + $0x178] sm:$0xff]
  %v1209 = vld [vmem:[%s3 + $0x180] sm:$0xff]
  %v1210 = vld [vmem:[%s3 + $0x188] sm:$0xff]
  %v1211 = vld [vmem:[%s3 + $0x190] sm:$0xff]
  %v1212 = vld [vmem:[%s3 + $0x198] sm:$0xff]
  %v1213 = vld [vmem:[%s3 + $0x1a0] sm:$0xff]
  %v1214 = vld [vmem:[%s3 + $0x1a8] sm:$0xff]
  %v1215 = vld [vmem:[%s3 + $0x1b0] sm:$0xff]
  %v1216 = vld [vmem:[%s3 + $0x1b8] sm:$0xff]
  %v1217 = vld [vmem:[%s3 + $0x1c0] sm:$0xff]
  %v1218 = vld [vmem:[%s3 + $0x1c8] sm:$0xff]
  %v1219 = vld [vmem:[%s3 + $0x1d0] sm:$0xff]
  %v1220 = vld [vmem:[%s3 + $0x1d8] sm:$0xff]
  %v1221 = vld [vmem:[%s3 + $0x1e0] sm:$0xff]
  %v1222 = vld [vmem:[%s3 + $0x1e8] sm:$0xff]
  %v1223 = vld [vmem:[%s3 + $0x1f0] sm:$0xff]
  %v1224 = vld [vmem:[%s3 + $0x1f8] sm:$0xff]
  %v1225 = vld [vmem:[%s4] sm:$0x3]
  %v1227 = vperm.slane %v1225, 0
  %v1228 = vperm.slane %v1225, 1
  %1231 = vmatpush.msra.mxu0 %v1191
  %1232 = vmatpush.msra.mxu0 %v1189
  %1233 = vmatpush.msra.mxu0 %v1187
  %1234 = vmatpush.msra.mxu0 %v1185
  %1235 = vmatpush.msra.mxu0 %v1183
  %1236 = vmatpush.msra.mxu0 %v1181
  %1237 = vmatpush.msra.mxu0 %v1179
  %1238 = vmatpush.msra.mxu0 %v1177
  %1239 = vmatpush.msra.mxu0 %v1175
  %1240 = vmatpush.msra.mxu0 %v1173
  %1241 = vmatpush.msra.mxu0 %v1171
  %1242 = vmatpush.msra.mxu0 %v1169
  %1243 = vmatpush.msra.mxu0 %v1167
  %1244 = vmatpush.msra.mxu0 %v1165
  %1245 = vmatpush.msra.mxu0 %v1163
  %1246 = vmatpush.msra.mxu0 %v1161
  %1247 = vmatmul.f32.gmra.mxu0 %v1159
  %v1248 = vpop.f32.mrf.mxu0
  %v1249 = vadd.f32 %v1227, %v1248
  %1250 = vdwg.mxu0
  %1251 = vmatpush.msra.mxu0 %v1223
  %1252 = vmatpush.msra.mxu0 %v1221
  %1253 = vmatpush.msra.mxu0 %v1219
  %1254 = vmatpush.msra.mxu0 %v1217
  %1255 = vmatpush.msra.mxu0 %v1215
  %1256 = vmatpush.msra.mxu0 %v1213
  %1257 = vmatpush.msra.mxu0 %v1211
  %1258 = vmatpush.msra.mxu0 %v1209
  %1259 = vmatpush.msra.mxu0 %v1207
  %1260 = vmatpush.msra.mxu0 %v1205
  %1261 = vmatpush.msra.mxu0 %v1203
  %1262 = vmatpush.msra.mxu0 %v1201
  %1263 = vmatpush.msra.mxu0 %v1199
  %1264 = vmatpush.msra.mxu0 %v1197
  %1265 = vmatpush.msra.mxu0 %v1195
  %1266 = vmatpush.msra.mxu0 %v1193
  %1267 = vmatmul.f32.gmra.mxu0 %v1160
  %v1268 = vpop.f32.mrf.mxu0
  %v1269 = vadd.f32 %v1249, %v1268
  %1270 = vdwg.mxu0
  %1271 = vmatpush.msra.mxu0 %v1192
  %1272 = vmatpush.msra.mxu0 %v1190
  %1273 = vmatpush.msra.mxu0 %v1188
  %1274 = vmatpush.msra.mxu0 %v1186
  %1275 = vmatpush.msra.mxu0 %v1184
  %1276 = vmatpush.msra.mxu0 %v1182
  %1277 = vmatpush.msra.mxu0 %v1180
  %1278 = vmatpush.msra.mxu0 %v1178
  %1279 = vmatpush.msra.mxu0 %v1176
  %1280 = vmatpush.msra.mxu0 %v1174
  %1281 = vmatpush.msra.mxu0 %v1172
  %1282 = vmatpush.msra.mxu0 %v1170
  %1283 = vmatpush.msra.mxu0 %v1168
  %1284 = vmatpush.msra.mxu0 %v1166
  %1285 = vmatpush.msra.mxu0 %v1164
  %1286 = vmatpush.msra.mxu0 %v1162
  %1287 = vmatmul.f32.gmra.mxu0 %v1159
  %v1288 = vpop.f32.mrf.mxu0
  %v1289 = vadd.f32 %v1228, %v1288
  %1290 = vdwg.mxu0
  %1291 = vmatpush.msra.mxu0 %v1224
  %1292 = vmatpush.msra.mxu0 %v1222
  %1293 = vmatpush.msra.mxu0 %v1220
  %1294 = vmatpush.msra.mxu0 %v1218
  %1295 = vmatpush.msra.mxu0 %v1216
  %1296 = vmatpush.msra.mxu0 %v1214
  %1297 = vmatpush.msra.mxu0 %v1212
  %1298 = vmatpush.msra.mxu0 %v1210
  %1299 = vmatpush.msra.mxu0 %v1208
  %1300 = vmatpush.msra.mxu0 %v1206
  %1301 = vmatpush.msra.mxu0 %v1204
  %1302 = vmatpush.msra.mxu0 %v1202
  %1303 = vmatpush.msra.mxu0 %v1200
  %1304 = vmatpush.msra.mxu0 %v1198
  %1305 = vmatpush.msra.mxu0 %v1196
  %1306 = vmatpush.msra.mxu0 %v1194
  %1307 = vmatmul.f32.gmra.mxu0 %v1160
  %v1308 = vpop.f32.mrf.mxu0
  %v1309 = vadd.f32 %v1289, %v1308
  %1310 = vdwg.mxu0
  %vm1311 = vcmp.ge.f32.partialorder %v1269, 0.0
  %vm1312 = vcmp.ge.f32.partialorder %v1309, 0.0
  %v1313 = vstv %s788
  %v1314 = vmul.f32 %v1313, %v1269
  %v1315 = vmul.f32 %v1313, %v1309
  %v1316 = vsel %vm1311, %v1269, %v1314
  %v1317 = vsel %vm1312, %v1309, %v1315
  %v1318 = vld [vmem:[%s5] sm:$0xff]
  %v1319 = vld [vmem:[%s5 + $0x8] sm:$0xff]
  %v1320 = vld [vmem:[%s5 + $0x10] sm:$0xff]
  %v1321 = vld [vmem:[%s5 + $0x18] sm:$0xff]
  %v1322 = vld [vmem:[%s5 + $0x20] sm:$0xff]
  %v1323 = vld [vmem:[%s5 + $0x28] sm:$0xff]
  %v1324 = vld [vmem:[%s5 + $0x30] sm:$0xff]
  %v1325 = vld [vmem:[%s5 + $0x38] sm:$0xff]
  %v1326 = vld [vmem:[%s5 + $0x40] sm:$0xff]
  %v1327 = vld [vmem:[%s5 + $0x48] sm:$0xff]
  %v1328 = vld [vmem:[%s5 + $0x50] sm:$0xff]
  %v1329 = vld [vmem:[%s5 + $0x58] sm:$0xff]
  %v1330 = vld [vmem:[%s5 + $0x60] sm:$0xff]
  %v1331 = vld [vmem:[%s5 + $0x68] sm:$0xff]
  %v1332 = vld [vmem:[%s5 + $0x70] sm:$0xff]
  %v1333 = vld [vmem:[%s5 + $0x78] sm:$0xff]
  %v1334 = vld [vmem:[%s5 + $0x80] sm:$0xff]
  %v1335 = vld [vmem:[%s5 + $0x88] sm:$0xff]
  %v1336 = vld [vmem:[%s5 + $0x90] sm:$0xff]
  %v1337 = vld [vmem:[%s5 + $0x98] sm:$0xff]
  %v1338 = vld [vmem:[%s5 + $0xa0] sm:$0xff]
  %v1339 = vld [vmem:[%s5 + $0xa8] sm:$0xff]
  %v1340 = vld [vmem:[%s5 + $0xb0] sm:$0xff]
  %v1341 = vld [vmem:[%s5 + $0xb8] sm:$0xff]
  %v1342 = vld [vmem:[%s5 + $0xc0] sm:$0xff]
  %v1343 = vld [vmem:[%s5 + $0xc8] sm:$0xff]
  %v1344 = vld [vmem:[%s5 + $0xd0] sm:$0xff]
  %v1345 = vld [vmem:[%s5 + $0xd8] sm:$0xff]
  %v1346 = vld [vmem:[%s5 + $0xe0] sm:$0xff]
  %v1347 = vld [vmem:[%s5 + $0xe8] sm:$0xff]
  %v1348 = vld [vmem:[%s5 + $0xf0] sm:$0xff]
  %v1349 = vld [vmem:[%s5 + $0xf8] sm:$0xff]
  %v1350 = vld [vmem:[%s6] sm:$0x1]
  %v1352 = vperm.slane %v1350, 0
  %1354 = vmatpush.msra.mxu0 %v1333
  %1355 = vmatpush.msra.mxu0 %v1332
  %1356 = vmatpush.msra.mxu0 %v1331
  %1357 = vmatpush.msra.mxu0 %v1330
  %1358 = vmatpush.msra.mxu0 %v1329
  %1359 = vmatpush.msra.mxu0 %v1328
  %1360 = vmatpush.msra.mxu0 %v1327
  %1361 = vmatpush.msra.mxu0 %v1326
  %1362 = vmatpush.msra.mxu0 %v1325
  %1363 = vmatpush.msra.mxu0 %v1324
  %1364 = vmatpush.msra.mxu0 %v1323
  %1365 = vmatpush.msra.mxu0 %v1322
  %1366 = vmatpush.msra.mxu0 %v1321
  %1367 = vmatpush.msra.mxu0 %v1320
  %1368 = vmatpush.msra.mxu0 %v1319
  %1369 = vmatpush.msra.mxu0 %v1318
  %1370 = vmatmul.f32.gmra.mxu0 %v1316
  %v1371 = vpop.f32.mrf.mxu0
  %v1372 = vadd.f32 %v1352, %v1371
  %1373 = vdwg.mxu0
  %1374 = vmatpush.msra.mxu0 %v1349
  %1375 = vmatpush.msra.mxu0 %v1348
  %1376 = vmatpush.msra.mxu0 %v1347
  %1377 = vmatpush.msra.mxu0 %v1346
  %1378 = vmatpush.msra.mxu0 %v1345
  %1379 = vmatpush.msra.mxu0 %v1344
  %1380 = vmatpush.msra.mxu0 %v1343
  %1381 = vmatpush.msra.mxu0 %v1342
  %1382 = vmatpush.msra.mxu0 %v1341
  %1383 = vmatpush.msra.mxu0 %v1340
  %1384 = vmatpush.msra.mxu0 %v1339
  %1385 = vmatpush.msra.mxu0 %v1338
  %1386 = vmatpush.msra.mxu0 %v1337
  %1387 = vmatpush.msra.mxu0 %v1336
  %1388 = vmatpush.msra.mxu0 %v1335
  %1389 = vmatpush.msra.mxu0 %v1334
  %1390 = vmatmul.f32.gmra.mxu0 %v1317
  %v1391 = vpop.f32.mrf.mxu0
  %v1392 = vadd.f32 %v1372, %v1391
  %1393 = vdwg.mxu0
  %1394 = vst [vmem:[%s9] sm:$0xff] %v1392
  // Predicated region
  $region38: #{embedding_net_forward.1} parent=0 // pred_check
    _
  $region39: #{embedding_net_forward.1} parent=0 // pred_check_branch
    %1396 = sbr.rel (0) target = $region41
  $region40: #{embedding_net_forward.1} parent=0 // pred_region
    _
  $region41: #{embedding_net_forward.1} parent=0 // pred_fallthru
    _
  // Predicated region
  $region42: #{embedding_net_forward.1} parent=0 // pred_check
    _
  $region43: #{embedding_net_forward.1} parent=0 // pred_check_branch
    %1398 = sbr.rel (0) target = $region45
  $region44: #{embedding_net_forward.1} parent=0 // pred_region
    _
  $region45: #{embedding_net_forward.1} parent=0 // pred_fallthru
    _

</llo_original>
